<compile_context>
chip_gen: v6e
topology: v6e:2x2x1
jax: 0.10.0
libtpu: 0.0.40
codegen_flags: <defaults>
</compile_context>

<pallas_src>
import numpy as np
import jax
import jax.numpy as jnp
from jax.experimental import pallas as pl
from jax.experimental.pallas import tpu as pltpu


# -----------------------------------------------------------------------------
# Parameter construction (glue).  Because node_attrs are pure scalars (Ax0e),
# every FullyConnectedTensorProduct(x_irreps, Ax0e, out_irreps) is exactly
#   out[n, o] = sum_{a} attr[n, a] * (x[n, :] @ W_a)[o]
# with a block-structured, path-normalized W_a baked in here.
# -----------------------------------------------------------------------------
def build_fctp_wbig(rng, in_entries, out_entries, num_attr, zero=False):
    """Dense [A*Din, Dout] weight for FCTP(x_irreps, Ax0e, out_irreps).

    in_entries/out_entries: list of (mul, l) with l in {0, 1}.
    Path normalization: 1/sqrt(sum over matching input entries of mul_in * A).
    """
    def dims(entries):
        offs, d = [], 0
        for mul, l in entries:
            offs.append(d)
            d += mul * (2 * l + 1)
        return offs, d

    in_offs, din = dims(in_entries)
    out_offs, dout = dims(out_entries)
    W = np.zeros((num_attr * din, dout), dtype=np.float32)
    for oe, (mul_o, l_o) in enumerate(out_entries):
        matched = [(ie, mul_i) for ie, (mul_i, l_i) in enumerate(in_entries) if l_i == l_o]
        if not matched:
            continue
        norm = 1.0 / np.sqrt(sum(mul_i * num_attr for _, mul_i in matched))
        for ie, mul_i in matched:
            if zero:
                w = np.zeros((mul_i, num_attr, mul_o), np.float32)
            else:
                w = rng.standard_normal((mul_i, num_attr, mul_o)).astype(np.float32)
            for m in range(2 * l_o + 1):
                for u in range(mul_i):
                    icol = in_offs[ie] + m * mul_i + u
                    for a in range(num_attr):
                        for v in range(mul_o):
                            ocol = out_offs[oe] + m * mul_o + v
                            W[a * din + icol, ocol] = norm * w[u, a, v]
    return jnp.asarray(W)


# -----------------------------------------------------------------------------
# Fused PointConv forward: single pallas_call, grid over edge tiles.
# -----------------------------------------------------------------------------
def point_conv_forward(node_feats, node_attrs, edge_attrs, edge_emb,
                       edge_src, edge_dst, params, *, edge_tile=128):
    N, Dn = node_feats.shape
    A = node_attrs.shape[1]
    E, Dea = edge_attrs.shape
    Demb = edge_emb.shape[1]
    W_node = params["W_node"]        # (A*Dn, 2*Dn)  : [W_sc | W_lin1]
    W_agg = params["W_agg"]          # (A*32, Dn+1)  : [W_lin2 | W_alpha], 1/sqrt(avg_nbr) folded
    W_mlp1 = params["W_mlp1"]        # (Demb, H),  1/sqrt(Demb) folded in
    W_mlp2 = params["W_mlp2"]        # (H, 16),    1/sqrt(H) * normalize2mom(silu) folded in
    D_out = Dn
    TP_OUT = 32
    INV_SQRT3 = np.float32(1.0 / np.sqrt(3.0))

    # ---- pad node/edge axes to lane multiples and go feature-major ----------
    Np = ((max(N, 1) + 127) // 128) * 128
    TE = edge_tile
    Ep = ((max(E, 1) + TE - 1) // TE) * TE
    n_tiles = Ep // TE

    nf_t = jnp.zeros((Dn, Np), jnp.float32).at[:, :N].set(node_feats.T)
    na_t = jnp.zeros((A, Np), jnp.float32).at[:, :N].set(node_attrs.T)
    ea_t = jnp.zeros((Dea, Ep), jnp.float32).at[:, :E].set(edge_attrs.T)
    ee_t = jnp.zeros((Demb, Ep), jnp.float32).at[:, :E].set(edge_emb.T)
    # padded edges get src/dst = -1 -> their one-hot rows/cols are all zero
    src2d = jnp.full((1, Ep), -1, jnp.int32).at[0, :E].set(edge_src.astype(jnp.int32))
    dst2d = jnp.full((Ep, 1), -1, jnp.int32).at[:E, 0].set(edge_dst.astype(jnp.int32))

    wn_t = jnp.asarray(W_node).T      # (2*Dn, A*Dn)
    wa_t = jnp.asarray(W_agg).T       # (Dn+1, A*TP_OUT)
    w1_t = jnp.asarray(W_mlp1).T      # (H, Demb)
    w2_t = jnp.asarray(W_mlp2).T      # (16, H)

    def kernel(src_ref, dst_ref, nf_ref, na_ref, ea_ref, ee_ref,
               wn_ref, wa_ref, w1_ref, w2_ref,
               o_ref, feats1_scr, sc_scr, agg_scr):
        t = pl.program_id(0)
        last = pl.num_programs(0) - 1

        # ---- tile 0: fused sc + lin1 (one FCTP matmul), init aggregate -----
        @pl.when(t == 0)
        def _():
            x_t = nf_ref[...]                                        # (Dn, Np)
            # z^T[a*Dn + i, n] = attrs[n, a] * x[n, i] ; sublane-aligned concat
            z_t = jnp.concatenate(
                [na_ref[a:a + 1, :] * x_t for a in range(A)], axis=0)  # (A*Dn, Np)
            node_out = jnp.dot(wn_ref[...], z_t,
                               preferred_element_type=jnp.float32)     # (2*Dn, Np)
            sc_scr[...] = node_out[:D_out, :]                          # self.sc
            feats1_scr[...] = node_out[D_out:D_out + Dn, :].astype(jnp.bfloat16)
            agg_scr[...] = jnp.zeros_like(agg_scr)

        # ---- gather lin1(node_feats) at edge_src (bf16 one-hot on MXU) -----
        src = src_ref[...]                                             # (1, TE)
        node_iota = jax.lax.broadcasted_iota(jnp.int32, (Np, TE), 0)
        gat = (node_iota == src).astype(jnp.bfloat16)                  # (Np, TE)
        xg = jnp.dot(feats1_scr[...], gat,
                     preferred_element_type=jnp.float32)               # (Dn, TE)

        # ---- radial MLP: edge_embedding -> silu -> uvu tp weights ----------
        h = jax.nn.silu(jnp.dot(w1_ref[...], ee_ref[...],
                                preferred_element_type=jnp.float32))   # (H, TE)
        tw = jnp.dot(w2_ref[...], h,
                     preferred_element_type=jnp.float32)               # (16, TE)

        # ---- uvu tensor product with edge spherical harmonics --------------
        # TODO(synk): e3nn's per-path weight normalization for the uvu TP is
        # not reproduced beyond the 1/sqrt(3) CG factor on 1o x 1o -> 0e.
        ea = ea_ref[...]                                               # (4, TE)
        x0 = xg[0:4, :]                                                # 4x0e
        x1 = [xg[4 + 4 * m: 8 + 4 * m, :] for m in range(3)]           # 4x1o, m-major
        y0 = ea[0:1, :]                                                # 1x0e
        y1 = [ea[1 + m: 2 + m, :] for m in range(3)]                   # 1x1o
        wA, wB = tw[0:4, :], tw[4:8, :]
        wC, wD = tw[8:12, :], tw[12:16, :]
        outA = wA * x0 * y0                                            # 0e*0e->0e
        dot11 = x1[0] * y1[0] + x1[1] * y1[1] + x1[2] * y1[2]
        outB = wB * dot11 * INV_SQRT3                                  # 1o*1o->0e
        outC = [wC * x0 * y1[m] for m in range(3)]                     # 0e*1o->1o
        outD = [wD * x1[m] * y0 for m in range(3)]                     # 1o*0e->1o
        msg = jnp.concatenate([outA, outB] + outC + outD, axis=0)      # (32, TE)

        # ---- scatter-add over edge_dst into resident aggregate -------------
        dst = dst_ref[...]                                             # (TE, 1)
        lane_iota = jax.lax.broadcasted_iota(jnp.int32, (TE, Np), 1)
        sca = (lane_iota == dst).astype(jnp.bfloat16)                  # (TE, Np)
        agg_scr[...] += jnp.dot(msg.astype(jnp.bfloat16), sca,
                                preferred_element_type=jnp.float32)    # (32, Np)

        # ---- last tile: fused lin2 + alpha, gated combine, store -----------
        @pl.when(t == last)
        def _():
            agg = agg_scr[...]                                         # (32, Np)
            z2 = jnp.concatenate(
                [na_ref[a:a + 1, :] * agg for a in range(A)], axis=0)  # (A*32, Np)
            ao = jnp.dot(wa_ref[...], z2,
                         preferred_element_type=jnp.float32)           # (Dn+1, Np)
            conv_out = ao[:D_out, :]
            alpha = ao[D_out:D_out + 1, :]
            # sc.output_mask is all ones for this irreps config, so
            # (1 - m + alpha * m) == alpha (mask folded at build time).
            o_ref[...] = sc_scr[...] + alpha * conv_out

    grid_spec = pltpu.PrefetchScalarGridSpec(
        num_scalar_prefetch=0,
        grid=(n_tiles,),
        in_specs=[
            pl.BlockSpec((1, TE), lambda t: (0, t)),        # edge_src (lane-major)
            pl.BlockSpec((TE, 1), lambda t: (t, 0)),        # edge_dst (sublane-major)
            pl.BlockSpec((Dn, Np), lambda t: (0, 0)),       # node_feats^T (resident)
            pl.BlockSpec((A, Np), lambda t: (0, 0)),        # node_attrs^T (resident)
            pl.BlockSpec((Dea, TE), lambda t: (0, t)),      # edge_attrs^T tile
            pl.BlockSpec((Demb, TE), lambda t: (0, t)),     # edge_embedding^T tile
            pl.BlockSpec(wn_t.shape, lambda t: (0, 0)),
            pl.BlockSpec(wa_t.shape, lambda t: (0, 0)),
            pl.BlockSpec(w1_t.shape, lambda t: (0, 0)),
            pl.BlockSpec(w2_t.shape, lambda t: (0, 0)),
        ],
        out_specs=pl.BlockSpec((D_out, Np), lambda t: (0, 0)),
        scratch_shapes=[
            pltpu.VMEM((Dn, Np), jnp.bfloat16),     # feats1 = lin1(node_feats)
            pltpu.VMEM((D_out, Np), jnp.float32),   # sc output
            pltpu.VMEM((TP_OUT, Np), jnp.float32),  # aggregated message
        ],
    )

    out_t = pl.pallas_call(
        kernel,
        out_shape=jax.ShapeDtypeStruct((D_out, Np), jnp.float32),
        grid_spec=grid_spec,
        compiler_params=pltpu.CompilerParams(
            dimension_semantics=("arbitrary",),       # edge axis carries state
            vmem_limit_bytes=32 * 1024 * 1024),
    )(src2d, dst2d, nf_t, na_t, ea_t, ee_t, wn_t, wa_t, w1_t, w2_t)

    return out_t[:, :N].T                             # back to node-major (N, D_out)


if __name__ == "__main__":
    N, E = 100, 240                                   # padded to 128 / 256 internally
    NODE_DIM, ATTR_DIM, EMB_DIM, HID = 16, 3, 8, 8
    AVG_NUM_NEIGHBORS = 2.0

    key = jax.random.PRNGKey(0)
    k1, k2, k3, k4, k5, k6 = jax.random.split(key, 6)

    node_feats = jax.random.normal(k1, (N, NODE_DIM), jnp.float32)
    node_attrs = jax.random.normal(k2, (N, ATTR_DIM), jnp.float32)
    # edge_attrs = component-normalized spherical harmonics of random edge vectors
    vec = jax.random.normal(k3, (E, 3), jnp.float32)
    unit = vec / jnp.linalg.norm(vec, axis=1, keepdims=True)
    edge_attrs = jnp.concatenate([jnp.ones((E, 1), jnp.float32),
                                  jnp.sqrt(3.0) * unit], axis=1)       # (E, 4)
    edge_emb = jax.random.normal(k4, (E, EMB_DIM), jnp.float32)
    edge_src = jax.random.randint(k5, (E,), 0, N, dtype=jnp.int32)
    edge_dst = jax.random.randint(k6, (E,), 0, N, dtype=jnp.int32)

    rng = np.random.default_rng(0)
    node_entries = [(4, 0), (4, 1)]                    # 4x0e + 4x1o
    tp_out_entries = [(4, 0), (4, 0), (4, 1), (4, 1)]  # uvu output
    conv_entries = [(4, 0), (4, 1)]                    # conv_layer_irreps

    # self.sc / self.lin1 share node_feats as input -> one concatenated weight.
    W_sc = build_fctp_wbig(rng, node_entries, conv_entries, ATTR_DIM)
    W_lin1 = build_fctp_wbig(rng, node_entries, node_entries, ATTR_DIM)
    W_node = jnp.concatenate([W_sc, W_lin1], axis=1)                   # (48, 32)

    # self.lin2 / self.alpha share the aggregated message as input.
    # 1/sqrt(avg_num_neighbors) folded in (FCTP is linear in its first input).
    # alpha weights start at zero (matches `self.alpha.weight.zero_()`).
    inv_scale = np.float32(1.0 / np.sqrt(AVG_NUM_NEIGHBORS))
    W_lin2 = build_fctp_wbig(rng, tp_out_entries, conv_entries, ATTR_DIM)
    W_alpha = build_fctp_wbig(rng, tp_out_entries, [(1, 0)], ATTR_DIM, zero=True)
    W_agg = jnp.concatenate([W_lin2, W_alpha], axis=1) * inv_scale     # (96, 17)

    # normalize2mom constant for silu: c = 1/sqrt(E_{z~N(0,1)}[silu(z)^2]),
    # computed by quadrature (e3nn estimates it empirically; same value ~1.679).
    xs = np.linspace(-12.0, 12.0, 200001)
    dx = xs[1] - xs[0]
    silu_xs = xs / (1.0 + np.exp(-xs))
    phi = np.exp(-0.5 * xs * xs) / np.sqrt(2.0 * np.pi)
    silu_norm = np.float32(1.0 / np.sqrt(np.sum(silu_xs ** 2 * phi) * dx))

    # radial MLP weights with 1/sqrt(fan_in) and the activation's normalize2mom
    # constant folded in at build time.
    W_mlp1 = jnp.asarray(rng.standard_normal((EMB_DIM, HID)).astype(np.float32)) \
        * np.float32(1.0 / np.sqrt(EMB_DIM))
    W_mlp2 = jnp.asarray(rng.standard_normal((HID, 16)).astype(np.float32)) \
        * np.float32(1.0 / np.sqrt(HID)) * silu_norm

    params = {
        "W_node": W_node,
        "W_agg": W_agg,
        "W_mlp1": W_mlp1,
        "W_mlp2": W_mlp2,
    }

    out = point_conv_forward(node_feats, node_attrs, edge_attrs, edge_emb,
                             edge_src, edge_dst, params, edge_tile=128)
    jax.block_until_ready(out)
    assert out.shape == (N, NODE_DIM) and out.dtype == jnp.float32
    assert bool(jnp.all(jnp.isfinite(out)))
    print("KERNEL_OK")
</pallas_src>

<mosaic_0001>
module attributes {stable_mosaic.version = 11 : i64} {
  func.func @kernel(%arg0: i32, %arg1: memref<1x128xi32, #tpu.memory_space<vmem>>, %arg2: memref<128x1xi32, #tpu.memory_space<vmem>>, %arg3: memref<16x128xf32, #tpu.memory_space<vmem>>, %arg4: memref<3x128xf32, #tpu.memory_space<vmem>>, %arg5: memref<4x128xf32, #tpu.memory_space<vmem>>, %arg6: memref<8x128xf32, #tpu.memory_space<vmem>>, %arg7: memref<32x48xf32, #tpu.memory_space<vmem>>, %arg8: memref<17x96xf32, #tpu.memory_space<vmem>>, %arg9: memref<8x8xf32, #tpu.memory_space<vmem>>, %arg10: memref<16x8xf32, #tpu.memory_space<vmem>>, %arg11: memref<16x128xf32, #tpu.memory_space<vmem>>, %arg12: memref<16x128xbf16, #tpu.memory_space<vmem>>, %arg13: memref<16x128xf32, #tpu.memory_space<vmem>>, %arg14: memref<32x128xf32, #tpu.memory_space<vmem>>) attributes {dimension_semantics = [#tpu.dimension_semantics<arbitrary>], iteration_bounds = array<i64: 2>, scalar_prefetch = 0 : i64, scratch_operands = 3 : i64, tpu.core_type = #tpu.core_type<tc>, window_params = [{transform_indices = @transform_0, window_bounds = array<i64: 1, 128>}, {transform_indices = @transform_1, window_bounds = array<i64: 128, 1>}, {pipeline_mode = #tpu.pipeline_mode<synchronous>, transform_indices = @transform_2, window_bounds = array<i64: 16, 128>}, {pipeline_mode = #tpu.pipeline_mode<synchronous>, transform_indices = @transform_3, window_bounds = array<i64: 3, 128>}, {transform_indices = @transform_4, window_bounds = array<i64: 4, 128>}, {transform_indices = @transform_5, window_bounds = array<i64: 8, 128>}, {pipeline_mode = #tpu.pipeline_mode<synchronous>, transform_indices = @transform_6, window_bounds = array<i64: 32, 48>}, {pipeline_mode = #tpu.pipeline_mode<synchronous>, transform_indices = @transform_7, window_bounds = array<i64: 17, 96>}, {pipeline_mode = #tpu.pipeline_mode<synchronous>, transform_indices = @transform_8, window_bounds = array<i64: 8, 8>}, {pipeline_mode = #tpu.pipeline_mode<synchronous>, transform_indices = @transform_9, window_bounds = array<i64: 16, 8>}, {pipeline_mode = #tpu.pipeline_mode<synchronous>, transform_indices = @transform_10, window_bounds = array<i64: 16, 128>}]} {
    %c0_i32 = arith.constant 0 : i32
    %0 = arith.cmpi eq, %arg0, %c0_i32 : i32
    %1 = arith.extui %0 : i1 to i32
    %c0_i32_0 = arith.constant 0 : i32
    %2 = arith.cmpi ne, %1, %c0_i32_0 : i32
    scf.if %2 {
      %c0_24 = arith.constant 0 : index
      %c0_25 = arith.constant 0 : index
      %84 = vector.load %arg3[%c0_24, %c0_25] : memref<16x128xf32, #tpu.memory_space<vmem>>, vector<16x128xf32>
      %c0_26 = arith.constant 0 : index
      %c0_27 = arith.constant 0 : index
      %85 = vector.load %arg4[%c0_26, %c0_27] : memref<3x128xf32, #tpu.memory_space<vmem>>, vector<1x128xf32>
      %86 = vector.broadcast %85 : vector<1x128xf32> to vector<16x128xf32>
      %87 = arith.mulf %86, %84 : vector<16x128xf32>
      %c1 = arith.constant 1 : index
      %c0_28 = arith.constant 0 : index
      %88 = vector.load %arg4[%c1, %c0_28] : memref<3x128xf32, #tpu.memory_space<vmem>>, vector<1x128xf32>
      %89 = vector.broadcast %88 : vector<1x128xf32> to vector<16x128xf32>
      %90 = arith.mulf %89, %84 : vector<16x128xf32>
      %c2 = arith.constant 2 : index
      %c0_29 = arith.constant 0 : index
      %91 = vector.load %arg4[%c2, %c0_29] : memref<3x128xf32, #tpu.memory_space<vmem>>, vector<1x128xf32>
      %92 = vector.broadcast %91 : vector<1x128xf32> to vector<16x128xf32>
      %93 = arith.mulf %92, %84 : vector<16x128xf32>
      %94 = tpu.concatenate %87, %90, %93 in 0 : vector<16x128xf32>, vector<16x128xf32>, vector<16x128xf32> -> vector<48x128xf32>
      %c0_30 = arith.constant 0 : index
      %c0_31 = arith.constant 0 : index
      %95 = vector.load %arg7[%c0_30, %c0_31] : memref<32x48xf32, #tpu.memory_space<vmem>>, vector<32x48xf32>
      %cst_32 = arith.constant dense<0.000000e+00> : vector<32x128xf32>
      %96 = tpu.matmul %95, %94, %cst_32 {dimension_numbers = #tpu.dot_dimension_numbers<[1], [0], [0], [1], [0, 0, 1, 1], [], []>} : vector<32x48xf32>, vector<48x128xf32>, vector<32x128xf32> -> vector<32x128xf32>
      %97 = vector.extract_strided_slice %96 {offsets = [0, 0], sizes = [16, 128], strides = [1, 1]} : vector<32x128xf32> to vector<16x128xf32>
      %c0_33 = arith.constant 0 : index
      %c0_34 = arith.constant 0 : index
      %98 = vector.load %arg13[%c0_33, %c0_34] : memref<16x128xf32, #tpu.memory_space<vmem>>, vector<16x128xf32>
      tpu.vector_store %arg13[%c0_33, %c0_34], %97 {strides = array<i32>} : memref<16x128xf32, #tpu.memory_space<vmem>>, vector<16x128xf32>,
      %99 = vector.extract_strided_slice %96 {offsets = [16, 0], sizes = [16, 128], strides = [1, 1]} : vector<32x128xf32> to vector<16x128xf32>
      %100 = arith.truncf %99 : vector<16x128xf32> to vector<16x128xbf16>
      %c0_35 = arith.constant 0 : index
      %c0_36 = arith.constant 0 : index
      %101 = vector.load %arg12[%c0_35, %c0_36] : memref<16x128xbf16, #tpu.memory_space<vmem>>, vector<16x128xbf16>
      tpu.vector_store %arg12[%c0_35, %c0_36], %100 {strides = array<i32>} : memref<16x128xbf16, #tpu.memory_space<vmem>>, vector<16x128xbf16>,
      %cst_37 = arith.constant 0.000000e+00 : f32
      %102 = vector.broadcast %cst_37 : f32 to vector<32x128xf32>
      %c0_38 = arith.constant 0 : index
      %c0_39 = arith.constant 0 : index
      %103 = vector.load %arg14[%c0_38, %c0_39] : memref<32x128xf32, #tpu.memory_space<vmem>>, vector<32x128xf32>
      tpu.vector_store %arg14[%c0_38, %c0_39], %102 {strides = array<i32>} : memref<32x128xf32, #tpu.memory_space<vmem>>, vector<32x128xf32>,
    } else {
    }
    %c0 = arith.constant 0 : index
    %c0_1 = arith.constant 0 : index
    %3 = vector.load %arg1[%c0, %c0_1] : memref<1x128xi32, #tpu.memory_space<vmem>>, vector<1x128xi32>
    %4 = tpu.iota {dimensions = array<i32: 0>} : vector<128x128xi32>
    %5 = vector.broadcast %3 : vector<1x128xi32> to vector<128x128xi32>
    %6 = arith.cmpi eq, %4, %5 : vector<128x128xi32>
    %7 = arith.extui %6 : vector<128x128xi1> to vector<128x128xi32>
    %8 = arith.sitofp %7 : vector<128x128xi32> to vector<128x128xf32>
    %9 = arith.truncf %8 : vector<128x128xf32> to vector<128x128xbf16>
    %c0_2 = arith.constant 0 : index
    %c0_3 = arith.constant 0 : index
    %10 = vector.load %arg12[%c0_2, %c0_3] : memref<16x128xbf16, #tpu.memory_space<vmem>>, vector<16x128xbf16>
    %cst = arith.constant dense<0.000000e+00> : vector<16x128xf32>
    %11 = tpu.matmul %10, %9, %cst {dimension_numbers = #tpu.dot_dimension_numbers<[1], [0], [0], [1], [0, 0, 1, 1], [], []>} : vector<16x128xbf16>, vector<128x128xbf16>, vector<16x128xf32> -> vector<16x128xf32>
    %c0_4 = arith.constant 0 : index
    %c0_5 = arith.constant 0 : index
    %12 = vector.load %arg9[%c0_4, %c0_5] : memref<8x8xf32, #tpu.memory_space<vmem>>, vector<8x8xf32>
    %c0_6 = arith.constant 0 : index
    %c0_7 = arith.constant 0 : index
    %13 = vector.load %arg6[%c0_6, %c0_7] : memref<8x128xf32, #tpu.memory_space<vmem>>, vector<8x128xf32>
    %cst_8 = arith.constant dense<0.000000e+00> : vector<8x128xf32>
    %14 = tpu.matmul %12, %13, %cst_8 {dimension_numbers = #tpu.dot_dimension_numbers<[1], [0], [0], [1], [0, 0, 1, 1], [], []>} : vector<8x8xf32>, vector<8x128xf32>, vector<8x128xf32> -> vector<8x128xf32>
    %15 = arith.negf %14 : vector<8x128xf32>
    %16 = math.exp %15 : vector<8x128xf32>
    %cst_9 = arith.constant 1.000000e+00 : f32
    %17 = vector.broadcast %cst_9 : f32 to vector<8x128xf32>
    %18 = arith.addf %17, %16 : vector<8x128xf32>
    %19 = arith.divf %17, %18 : vector<8x128xf32>
    %20 = arith.mulf %14, %19 : vector<8x128xf32>
    %c0_10 = arith.constant 0 : index
    %c0_11 = arith.constant 0 : index
    %21 = vector.load %arg10[%c0_10, %c0_11] : memref<16x8xf32, #tpu.memory_space<vmem>>, vector<16x8xf32>
    %cst_12 = arith.constant dense<0.000000e+00> : vector<16x128xf32>
    %22 = tpu.matmul %21, %20, %cst_12 {dimension_numbers = #tpu.dot_dimension_numbers<[1], [0], [0], [1], [0, 0, 1, 1], [], []>} : vector<16x8xf32>, vector<8x128xf32>, vector<16x128xf32> -> vector<16x128xf32>
    %c0_13 = arith.constant 0 : index
    %c0_14 = arith.constant 0 : index
    %23 = vector.load %arg5[%c0_13, %c0_14] : memref<4x128xf32, #tpu.memory_space<vmem>>, vector<4x128xf32>
    %24 = vector.extract_strided_slice %11 {offsets = [0, 0], sizes = [4, 128], strides = [1, 1]} : vector<16x128xf32> to vector<4x128xf32>
    %25 = vector.extract_strided_slice %11 {offsets = [4, 0], sizes = [4, 128], strides = [1, 1]} : vector<16x128xf32> to vector<4x128xf32>
    %26 = vector.extract_strided_slice %11 {offsets = [8, 0], sizes = [4, 128], strides = [1, 1]} : vector<16x128xf32> to vector<4x128xf32>
    %27 = vector.extract_strided_slice %11 {offsets = [12, 0], sizes = [4, 128], strides = [1, 1]} : vector<16x128xf32> to vector<4x128xf32>
    %28 = vector.extract_strided_slice %23 {offsets = [0, 0], sizes = [1, 128], strides = [1, 1]} : vector<4x128xf32> to vector<1x128xf32>
    %29 = vector.extract_strided_slice %23 {offsets = [1, 0], sizes = [1, 128], strides = [1, 1]} : vector<4x128xf32> to vector<1x128xf32>
    %30 = vector.extract_strided_slice %23 {offsets = [2, 0], sizes = [1, 128], strides = [1, 1]} : vector<4x128xf32> to vector<1x128xf32>
    %31 = vector.extract_strided_slice %23 {offsets = [3, 0], sizes = [1, 128], strides = [1, 1]} : vector<4x128xf32> to vector<1x128xf32>
    %32 = vector.extract_strided_slice %22 {offsets = [0, 0], sizes = [4, 128], strides = [1, 1]} : vector<16x128xf32> to vector<4x128xf32>
    %33 = vector.extract_strided_slice %22 {offsets = [4, 0], sizes = [4, 128], strides = [1, 1]} : vector<16x128xf32> to vector<4x128xf32>
    %34 = vector.extract_strided_slice %22 {offsets = [8, 0], sizes = [4, 128], strides = [1, 1]} : vector<16x128xf32> to vector<4x128xf32>
    %35 = vector.extract_strided_slice %22 {offsets = [12, 0], sizes = [4, 128], strides = [1, 1]} : vector<16x128xf32> to vector<4x128xf32>
    %36 = arith.mulf %32, %24 : vector<4x128xf32>
    %37 = vector.broadcast %28 : vector<1x128xf32> to vector<4x128xf32>
    %38 = arith.mulf %36, %37 : vector<4x128xf32>
    %39 = vector.broadcast %29 : vector<1x128xf32> to vector<4x128xf32>
    %40 = arith.mulf %25, %39 : vector<4x128xf32>
    %41 = vector.broadcast %30 : vector<1x128xf32> to vector<4x128xf32>
    %42 = arith.mulf %26, %41 : vector<4x128xf32>
    %43 = arith.addf %40, %42 : vector<4x128xf32>
    %44 = vector.broadcast %31 : vector<1x128xf32> to vector<4x128xf32>
    %45 = arith.mulf %27, %44 : vector<4x128xf32>
    %46 = arith.addf %43, %45 : vector<4x128xf32>
    %47 = arith.mulf %33, %46 : vector<4x128xf32>
    %cst_15 = arith.constant 0.577350259 : f32
    %48 = vector.broadcast %cst_15 : f32 to vector<4x128xf32>
    %49 = arith.mulf %47, %48 : vector<4x128xf32>
    %50 = arith.mulf %34, %24 : vector<4x128xf32>
    %51 = vector.broadcast %29 : vector<1x128xf32> to vector<4x128xf32>
    %52 = arith.mulf %50, %51 : vector<4x128xf32>
    %53 = arith.mulf %34, %24 : vector<4x128xf32>
    %54 = vector.broadcast %30 : vector<1x128xf32> to vector<4x128xf32>
    %55 = arith.mulf %53, %54 : vector<4x128xf32>
    %56 = arith.mulf %34, %24 : vector<4x128xf32>
    %57 = vector.broadcast %31 : vector<1x128xf32> to vector<4x128xf32>
    %58 = arith.mulf %56, %57 : vector<4x128xf32>
    %59 = arith.mulf %35, %25 : vector<4x128xf32>
    %60 = vector.broadcast %28 : vector<1x128xf32> to vector<4x128xf32>
    %61 = arith.mulf %59, %60 : vector<4x128xf32>
    %62 = arith.mulf %35, %26 : vector<4x128xf32>
    %63 = vector.broadcast %28 : vector<1x128xf32> to vector<4x128xf32>
    %64 = arith.mulf %62, %63 : vector<4x128xf32>
    %65 = arith.mulf %35, %27 : vector<4x128xf32>
    %66 = vector.broadcast %28 : vector<1x128xf32> to vector<4x128xf32>
    %67 = arith.mulf %65, %66 : vector<4x128xf32>
    %68 = tpu.concatenate %38, %49, %52, %55, %58, %61, %64, %67 in 0 : vector<4x128xf32>, vector<4x128xf32>, vector<4x128xf32>, vector<4x128xf32>, vector<4x128xf32>, vector<4x128xf32>, vector<4x128xf32>, vector<4x128xf32> -> vector<32x128xf32>
    %c0_16 = arith.constant 0 : index
    %c0_17 = arith.constant 0 : index
    %69 = vector.load %arg2[%c0_16, %c0_17] : memref<128x1xi32, #tpu.memory_space<vmem>>, vector<128x1xi32>
    %70 = tpu.iota {dimensions = array<i32: 1>} : vector<128x128xi32>
    %71 = vector.broadcast %69 : vector<128x1xi32> to vector<128x128xi32>
    %72 = arith.cmpi eq, %70, %71 : vector<128x128xi32>
    %73 = arith.extui %72 : vector<128x128xi1> to vector<128x128xi32>
    %74 = arith.sitofp %73 : vector<128x128xi32> to vector<128x128xf32>
    %75 = arith.truncf %74 : vector<128x128xf32> to vector<128x128xbf16>
    %c0_18 = arith.constant 0 : index
    %c0_19 = arith.constant 0 : index
    %76 = vector.load %arg14[%c0_18, %c0_19] : memref<32x128xf32, #tpu.memory_space<vmem>>, vector<32x128xf32>
    %77 = arith.truncf %68 : vector<32x128xf32> to vector<32x128xbf16>
    %cst_20 = arith.constant dense<0.000000e+00> : vector<32x128xf32>
    %78 = tpu.matmul %77, %75, %cst_20 {dimension_numbers = #tpu.dot_dimension_numbers<[1], [0], [0], [1], [0, 0, 1, 1], [], []>} : vector<32x128xbf16>, vector<128x128xbf16>, vector<32x128xf32> -> vector<32x128xf32>
    %79 = arith.addf %76, %78 : vector<32x128xf32>
    %c0_21 = arith.constant 0 : index
    %c0_22 = arith.constant 0 : index
    %80 = vector.load %arg14[%c0_21, %c0_22] : memref<32x128xf32, #tpu.memory_space<vmem>>, vector<32x128xf32>
    tpu.vector_store %arg14[%c0_21, %c0_22], %79 {strides = array<i32>} : memref<32x128xf32, #tpu.memory_space<vmem>>, vector<32x128xf32>,
    %c1_i32 = arith.constant 1 : i32
    %81 = arith.cmpi eq, %arg0, %c1_i32 : i32
    %82 = arith.extui %81 : i1 to i32
    %c0_i32_23 = arith.constant 0 : i32
    %83 = arith.cmpi ne, %82, %c0_i32_23 : i32
    scf.if %83 {
      %c0_24 = arith.constant 0 : index
      %c0_25 = arith.constant 0 : index
      %84 = vector.load %arg14[%c0_24, %c0_25] : memref<32x128xf32, #tpu.memory_space<vmem>>, vector<32x128xf32>
      %c0_26 = arith.constant 0 : index
      %c0_27 = arith.constant 0 : index
      %85 = vector.load %arg4[%c0_26, %c0_27] : memref<3x128xf32, #tpu.memory_space<vmem>>, vector<1x128xf32>
      %86 = vector.broadcast %85 : vector<1x128xf32> to vector<32x128xf32>
      %87 = arith.mulf %86, %84 : vector<32x128xf32>
      %c1 = arith.constant 1 : index
      %c0_28 = arith.constant 0 : index
      %88 = vector.load %arg4[%c1, %c0_28] : memref<3x128xf32, #tpu.memory_space<vmem>>, vector<1x128xf32>
      %89 = vector.broadcast %88 : vector<1x128xf32> to vector<32x128xf32>
      %90 = arith.mulf %89, %84 : vector<32x128xf32>
      %c2 = arith.constant 2 : index
      %c0_29 = arith.constant 0 : index
      %91 = vector.load %arg4[%c2, %c0_29] : memref<3x128xf32, #tpu.memory_space<vmem>>, vector<1x128xf32>
      %92 = vector.broadcast %91 : vector<1x128xf32> to vector<32x128xf32>
      %93 = arith.mulf %92, %84 : vector<32x128xf32>
      %94 = tpu.concatenate %87, %90, %93 in 0 : vector<32x128xf32>, vector<32x128xf32>, vector<32x128xf32> -> vector<96x128xf32>
      %c0_30 = arith.constant 0 : index
      %c0_31 = arith.constant 0 : index
      %95 = vector.load %arg8[%c0_30, %c0_31] : memref<17x96xf32, #tpu.memory_space<vmem>>, vector<17x96xf32>
      %cst_32 = arith.constant dense<0.000000e+00> : vector<17x128xf32>
      %96 = tpu.matmul %95, %94, %cst_32 {dimension_numbers = #tpu.dot_dimension_numbers<[1], [0], [0], [1], [0, 0, 1, 1], [], []>} : vector<17x96xf32>, vector<96x128xf32>, vector<17x128xf32> -> vector<17x128xf32>
      %97 = vector.extract_strided_slice %96 {offsets = [0, 0], sizes = [16, 128], strides = [1, 1]} : vector<17x128xf32> to vector<16x128xf32>
      %98 = vector.extract_strided_slice %96 {offsets = [16, 0], sizes = [1, 128], strides = [1, 1]} : vector<17x128xf32> to vector<1x128xf32>
      %c0_33 = arith.constant 0 : index
      %c0_34 = arith.constant 0 : index
      %99 = vector.load %arg13[%c0_33, %c0_34] : memref<16x128xf32, #tpu.memory_space<vmem>>, vector<16x128xf32>
      %100 = vector.broadcast %98 : vector<1x128xf32> to vector<16x128xf32>
      %101 = arith.mulf %100, %97 : vector<16x128xf32>
      %102 = arith.addf %99, %101 : vector<16x128xf32>
      %c0_35 = arith.constant 0 : index
      %c0_36 = arith.constant 0 : index
      %103 = vector.load %arg11[%c0_35, %c0_36] : memref<16x128xf32, #tpu.memory_space<vmem>>, vector<16x128xf32>
      tpu.vector_store %arg11[%c0_35, %c0_36], %102 {strides = array<i32>} : memref<16x128xf32, #tpu.memory_space<vmem>>, vector<16x128xf32>,
    } else {
    }
    return
  }
  func.func @transform_0(%arg0: i32) -> (i32, i32) {
    %c0_i32 = arith.constant 0 : i32
    %c0_i32_0 = arith.constant 0 : i32
    return %c0_i32, %arg0 : i32, i32
  }
  func.func @transform_1(%arg0: i32) -> (i32, i32) {
    %c0_i32 = arith.constant 0 : i32
    %c0_i32_0 = arith.constant 0 : i32
    return %arg0, %c0_i32 : i32, i32
  }
  func.func @transform_2(%arg0: i32) -> (i32, i32) {
    %c0_i32 = arith.constant 0 : i32
    %c0_i32_0 = arith.constant 0 : i32
    %c0_i32_1 = arith.constant 0 : i32
    return %c0_i32, %c0_i32_0 : i32, i32
  }
  func.func @transform_3(%arg0: i32) -> (i32, i32) {
    %c0_i32 = arith.constant 0 : i32
    %c0_i32_0 = arith.constant 0 : i32
    %c0_i32_1 = arith.constant 0 : i32
    return %c0_i32, %c0_i32_0 : i32, i32
  }
  func.func @transform_4(%arg0: i32) -> (i32, i32) {
    %c0_i32 = arith.constant 0 : i32
    %c0_i32_0 = arith.constant 0 : i32
    return %c0_i32, %arg0 : i32, i32
  }
  func.func @transform_5(%arg0: i32) -> (i32, i32) {
    %c0_i32 = arith.constant 0 : i32
    %c0_i32_0 = arith.constant 0 : i32
    return %c0_i32, %arg0 : i32, i32
  }
  func.func @transform_6(%arg0: i32) -> (i32, i32) {
    %c0_i32 = arith.constant 0 : i32
    %c0_i32_0 = arith.constant 0 : i32
    %c0_i32_1 = arith.constant 0 : i32
    return %c0_i32, %c0_i32_0 : i32, i32
  }
  func.func @transform_7(%arg0: i32) -> (i32, i32) {
    %c0_i32 = arith.constant 0 : i32
    %c0_i32_0 = arith.constant 0 : i32
    %c0_i32_1 = arith.constant 0 : i32
    return %c0_i32, %c0_i32_0 : i32, i32
  }
  func.func @transform_8(%arg0: i32) -> (i32, i32) {
    %c0_i32 = arith.constant 0 : i32
    %c0_i32_0 = arith.constant 0 : i32
    %c0_i32_1 = arith.constant 0 : i32
    return %c0_i32, %c0_i32_0 : i32, i32
  }
  func.func @transform_9(%arg0: i32) -> (i32, i32) {
    %c0_i32 = arith.constant 0 : i32
    %c0_i32_0 = arith.constant 0 : i32
    %c0_i32_1 = arith.constant 0 : i32
    return %c0_i32, %c0_i32_0 : i32, i32
  }
  func.func @transform_10(%arg0: i32) -> (i32, i32) {
    %c0_i32 = arith.constant 0 : i32
    %c0_i32_0 = arith.constant 0 : i32
    %c0_i32_1 = arith.constant 0 : i32
    return %c0_i32, %c0_i32_0 : i32, i32
  }
}

</mosaic_0001>

<llo_original>
// kernel: tpu_custom_call.1
$region0: #{tpu_custom_call.1}
  #allocation0 [shape = 'u32[]', space=smem, size = 0x4, offset = 0x4, fixed_abs, tag = 'smem constant byte address 0x4 - core index']
  #allocation1 [shape = 'u32[144,128]{1,0:T(1,128)}', space=vmem, size = 0x12000, scoped, tag = 'internal scratch']
  #allocation2 [shape = 'bf16[16,128]{1,0:T(8,128)(2,1)}', space=vmem, size = 0x1000, scoped, tag = 'scratch operand']
  #allocation3 [shape = 'f32[16,128]{1,0:T(8,128)}', space=vmem, size = 0x2000, scoped, tag = 'scratch operand']
  #allocation4 [shape = 'f32[32,128]{1,0:T(8,128)}', space=vmem, size = 0x4000, scoped, tag = 'scratch operand']
  %s0 = inlined_call_operand.vmem [shape: s32[1,256], index: 0, kind: input, shape index: {}]
  %s1 = inlined_call_operand.vmem [shape: s32[256,1], index: 1, kind: input, shape index: {}]
  %s2 = inlined_call_operand.vmem [shape: f32[16,128], index: 2, kind: input, shape index: {}]
  %s3 = inlined_call_operand.vmem [shape: f32[3,128], index: 3, kind: input, shape index: {}]
  %s4 = inlined_call_operand.vmem [shape: f32[4,256], index: 4, kind: input, shape index: {}]
  %s5 = inlined_call_operand.vmem [shape: f32[8,256], index: 5, kind: input, shape index: {}]
  %s6 = inlined_call_operand.vmem [shape: f32[32,48], index: 6, kind: input, shape index: {}]
  %s7 = inlined_call_operand.vmem [shape: f32[17,96], index: 7, kind: input, shape index: {}]
  %s8 = inlined_call_operand.vmem [shape: f32[8,8], index: 8, kind: input, shape index: {}]
  %s9 = inlined_call_operand.vmem [shape: f32[16,8], index: 9, kind: input, shape index: {}]
  %s10 = inlined_call_operand.hbm [shape: f32[16,128], index: 10, kind: output, shape index: {}]
  %s11 = sld [smem:[#allocation0]]
  $region81: #{tpu_custom_call.1} parent=0
    _
  %s13 = ssub.s32 1, %s11
  %s14 = scalar_select 0, %s13, %s11
  $region1: #{tpu_custom_call.1} parent=0
    #allocation5 [shape = 'u8[8192]{0}', space=vmem, size = 0x2000, scoped, tag = 'output window, operand 0, single buffered']
    #allocation6 [shape = 's32[2]{0}', space=sflag, size = 0x8, scoped, tag = 'scoped memory for tpu_custom_call.1']
    %15 = vsyncpa [#allocation6], 0
    loop: start=0, step=1, limit=4
    $region2: #{tpu_custom_call.1} parent=1 // loop_pre_header
      _
    $region3: #{tpu_custom_call.1} parent=1 // loop_header
      %s17 = sphi 0, %s21
      %p18 = scmp.ge.s32.totalorder %s17, 4
      %s27 = sphi 0, %s29
      %s30 = sphi 0, %s27
      %s31 = sphi 0, %s30
      %s47 = sphi 0, %s31
      %s53 = sphi 0, %s55
      %s56 = sphi 0, %s53
      %s57 = sphi 0, %s56
      %s73 = sphi 0, %s57
      %s77 = sphi 0, %s77
      %s79 = sphi 0, %s77
      %s80 = sphi 0, %s79
      %s94 = sphi 0, %s80
      %s98 = sphi 0, %s98
      %s100 = sphi 0, %s98
      %s101 = sphi 0, %s100
      %s115 = sphi 0, %s101
      %s121 = sphi 0, %s123
      %s124 = sphi 0, %s121
      %s125 = sphi 0, %s124
      %s141 = sphi 0, %s125
      %s147 = sphi 0, %s149
      %s150 = sphi 0, %s147
      %s151 = sphi 0, %s150
      %s167 = sphi 0, %s151
      %s171 = sphi 0, %s171
      %s173 = sphi 0, %s171
      %s174 = sphi 0, %s173
      %s188 = sphi 0, %s174
      %s192 = sphi 0, %s192
      %s194 = sphi 0, %s192
      %s195 = sphi 0, %s194
      %s209 = sphi 0, %s195
      %s213 = sphi 0, %s213
      %s215 = sphi 0, %s213
      %s216 = sphi 0, %s215
      %s230 = sphi 0, %s216
      %s234 = sphi 0, %s234
      %s236 = sphi 0, %s234
      %s237 = sphi 0, %s236
      %s251 = sphi 0, %s237
      %s255 = sphi 0, %s255
      %s257 = sphi 0, %s255
      %s258 = sphi 0, %s257
      %s272 = sphi 0, %s258
    $region4: #{tpu_custom_call.1} parent=1 // loop_header_branch
      %20 = sbr.rel (%p18) target = $region8
    $region5: #{tpu_custom_call.1} parent=1 // loop_body
      %s22 = ssub.s32 %s17, 1
      %s23 = ssub.s32 %s17, 2
      %s24 = sadd.s32 %s17, 1
      %s25 = ssub.s32 %s17, %s24
      %p26 = scmp.eq.s32.totalorder %s25, 0
      %s28 = sadd.s32 %s27, 1
      %s29 = scalar_select %p26, %s27, %s28
      %p32 = pneg %p26
      %p33 = scmp.eq.s32.totalorder %s17, 1
      %p34 = por %p32, %p33
      %p35 = scmp.ne.s32.totalorder %s27, %s30
      %p36 = scmp.eq.s32.totalorder %s17, 0
      %p37 = por %p35, %p36
      %p38 = scmp.ne.s32.totalorder %s27, %s30
      %p39 = scmp.eq.s32.totalorder %s22, 1
      %p40 = por %p38, %p39
      %p41 = scmp.ne.s32.totalorder %s30, %s31
      %p42 = scmp.eq.s32.totalorder %s22, 0
      %p43 = por %p41, %p42
      %p44 = scmp.ne.s32.totalorder %s30, %s31
      %p45 = scmp.eq.s32.totalorder %s23, 1
      %p46 = por %p44, %p45
      %p48 = scmp.ne.s32.totalorder %s31, %s47
      %p49 = scmp.eq.s32.totalorder %s23, 0
      %p50 = por %p48, %p49
      %s51 = ssub.s32 %s17, %s24
      %p52 = scmp.eq.s32.totalorder %s51, 0
      %s54 = sadd.s32 %s53, 1
      %s55 = scalar_select %p52, %s53, %s54
      %p58 = pneg %p52
      %p59 = scmp.eq.s32.totalorder %s17, 1
      %p60 = por %p58, %p59
      %p61 = scmp.ne.s32.totalorder %s53, %s56
      %p62 = scmp.eq.s32.totalorder %s17, 0
      %p63 = por %p61, %p62
      %p64 = scmp.ne.s32.totalorder %s53, %s56
      %p65 = scmp.eq.s32.totalorder %s22, 1
      %p66 = por %p64, %p65
      %p67 = scmp.ne.s32.totalorder %s56, %s57
      %p68 = scmp.eq.s32.totalorder %s22, 0
      %p69 = por %p67, %p68
      %p70 = scmp.ne.s32.totalorder %s56, %s57
      %p71 = scmp.eq.s32.totalorder %s23, 1
      %p72 = por %p70, %p71
      %p74 = scmp.ne.s32.totalorder %s57, %s73
      %p75 = scmp.eq.s32.totalorder %s23, 0
      %p76 = por %p74, %p75
      %s78 = sadd.s32 %s77, 1
      %p81 = scmp.eq.s32.totalorder %s17, 1
      %p82 = scmp.ne.s32.totalorder %s77, %s79
      %p83 = scmp.eq.s32.totalorder %s17, 0
      %p84 = por %p82, %p83
      %p85 = scmp.ne.s32.totalorder %s77, %s79
      %p86 = scmp.eq.s32.totalorder %s22, 1
      %p87 = por %p85, %p86
      %p88 = scmp.ne.s32.totalorder %s79, %s80
      %p89 = scmp.eq.s32.totalorder %s22, 0
      %p90 = por %p88, %p89
      %p91 = scmp.ne.s32.totalorder %s79, %s80
      %p92 = scmp.eq.s32.totalorder %s23, 1
      %p93 = por %p91, %p92
      %p95 = scmp.ne.s32.totalorder %s80, %s94
      %p96 = scmp.eq.s32.totalorder %s23, 0
      %p97 = por %p95, %p96
      %s99 = sadd.s32 %s98, 1
      %p102 = scmp.eq.s32.totalorder %s17, 1
      %p103 = scmp.ne.s32.totalorder %s98, %s100
      %p104 = scmp.eq.s32.totalorder %s17, 0
      %p105 = por %p103, %p104
      %p106 = scmp.ne.s32.totalorder %s98, %s100
      %p107 = scmp.eq.s32.totalorder %s22, 1
      %p108 = por %p106, %p107
      %p109 = scmp.ne.s32.totalorder %s100, %s101
      %p110 = scmp.eq.s32.totalorder %s22, 0
      %p111 = por %p109, %p110
      %p112 = scmp.ne.s32.totalorder %s100, %s101
      %p113 = scmp.eq.s32.totalorder %s23, 1
      %p114 = por %p112, %p113
      %p116 = scmp.ne.s32.totalorder %s101, %s115
      %p117 = scmp.eq.s32.totalorder %s23, 0
      %p118 = por %p116, %p117
      %s119 = ssub.s32 %s17, %s24
      %p120 = scmp.eq.s32.totalorder %s119, 0
      %s122 = sadd.s32 %s121, 1
      %s123 = scalar_select %p120, %s121, %s122
      %p126 = pneg %p120
      %p127 = scmp.eq.s32.totalorder %s17, 1
      %p128 = por %p126, %p127
      %p129 = scmp.ne.s32.totalorder %s121, %s124
      %p130 = scmp.eq.s32.totalorder %s17, 0
      %p131 = por %p129, %p130
      %p132 = scmp.ne.s32.totalorder %s121, %s124
      %p133 = scmp.eq.s32.totalorder %s22, 1
      %p134 = por %p132, %p133
      %p135 = scmp.ne.s32.totalorder %s124, %s125
      %p136 = scmp.eq.s32.totalorder %s22, 0
      %p137 = por %p135, %p136
      %p138 = scmp.ne.s32.totalorder %s124, %s125
      %p139 = scmp.eq.s32.totalorder %s23, 1
      %p140 = por %p138, %p139
      %p142 = scmp.ne.s32.totalorder %s125, %s141
      %p143 = scmp.eq.s32.totalorder %s23, 0
      %p144 = por %p142, %p143
      %s145 = ssub.s32 %s17, %s24
      %p146 = scmp.eq.s32.totalorder %s145, 0
      %s148 = sadd.s32 %s147, 1
      %s149 = scalar_select %p146, %s147, %s148
      %p152 = pneg %p146
      %p153 = scmp.eq.s32.totalorder %s17, 1
      %p154 = por %p152, %p153
      %p155 = scmp.ne.s32.totalorder %s147, %s150
      %p156 = scmp.eq.s32.totalorder %s17, 0
      %p157 = por %p155, %p156
      %p158 = scmp.ne.s32.totalorder %s147, %s150
      %p159 = scmp.eq.s32.totalorder %s22, 1
      %p160 = por %p158, %p159
      %p161 = scmp.ne.s32.totalorder %s150, %s151
      %p162 = scmp.eq.s32.totalorder %s22, 0
      %p163 = por %p161, %p162
      %p164 = scmp.ne.s32.totalorder %s150, %s151
      %p165 = scmp.eq.s32.totalorder %s23, 1
      %p166 = por %p164, %p165
      %p168 = scmp.ne.s32.totalorder %s151, %s167
      %p169 = scmp.eq.s32.totalorder %s23, 0
      %p170 = por %p168, %p169
      %s172 = sadd.s32 %s171, 1
      %p175 = scmp.eq.s32.totalorder %s17, 1
      %p176 = scmp.ne.s32.totalorder %s171, %s173
      %p177 = scmp.eq.s32.totalorder %s17, 0
      %p178 = por %p176, %p177
      %p179 = scmp.ne.s32.totalorder %s171, %s173
      %p180 = scmp.eq.s32.totalorder %s22, 1
      %p181 = por %p179, %p180
      %p182 = scmp.ne.s32.totalorder %s173, %s174
      %p183 = scmp.eq.s32.totalorder %s22, 0
      %p184 = por %p182, %p183
      %p185 = scmp.ne.s32.totalorder %s173, %s174
      %p186 = scmp.eq.s32.totalorder %s23, 1
      %p187 = por %p185, %p186
      %p189 = scmp.ne.s32.totalorder %s174, %s188
      %p190 = scmp.eq.s32.totalorder %s23, 0
      %p191 = por %p189, %p190
      %s193 = sadd.s32 %s192, 1
      %p196 = scmp.eq.s32.totalorder %s17, 1
      %p197 = scmp.ne.s32.totalorder %s192, %s194
      %p198 = scmp.eq.s32.totalorder %s17, 0
      %p199 = por %p197, %p198
      %p200 = scmp.ne.s32.totalorder %s192, %s194
      %p201 = scmp.eq.s32.totalorder %s22, 1
      %p202 = por %p200, %p201
      %p203 = scmp.ne.s32.totalorder %s194, %s195
      %p204 = scmp.eq.s32.totalorder %s22, 0
      %p205 = por %p203, %p204
      %p206 = scmp.ne.s32.totalorder %s194, %s195
      %p207 = scmp.eq.s32.totalorder %s23, 1
      %p208 = por %p206, %p207
      %p210 = scmp.ne.s32.totalorder %s195, %s209
      %p211 = scmp.eq.s32.totalorder %s23, 0
      %p212 = por %p210, %p211
      %s214 = sadd.s32 %s213, 1
      %p217 = scmp.eq.s32.totalorder %s17, 1
      %p218 = scmp.ne.s32.totalorder %s213, %s215
      %p219 = scmp.eq.s32.totalorder %s17, 0
      %p220 = por %p218, %p219
      %p221 = scmp.ne.s32.totalorder %s213, %s215
      %p222 = scmp.eq.s32.totalorder %s22, 1
      %p223 = por %p221, %p222
      %p224 = scmp.ne.s32.totalorder %s215, %s216
      %p225 = scmp.eq.s32.totalorder %s22, 0
      %p226 = por %p224, %p225
      %p227 = scmp.ne.s32.totalorder %s215, %s216
      %p228 = scmp.eq.s32.totalorder %s23, 1
      %p229 = por %p227, %p228
      %p231 = scmp.ne.s32.totalorder %s216, %s230
      %p232 = scmp.eq.s32.totalorder %s23, 0
      %p233 = por %p231, %p232
      %s235 = sadd.s32 %s234, 1
      %p238 = scmp.eq.s32.totalorder %s17, 1
      %p239 = scmp.ne.s32.totalorder %s234, %s236
      %p240 = scmp.eq.s32.totalorder %s17, 0
      %p241 = por %p239, %p240
      %p242 = scmp.ne.s32.totalorder %s234, %s236
      %p243 = scmp.eq.s32.totalorder %s22, 1
      %p244 = por %p242, %p243
      %p245 = scmp.ne.s32.totalorder %s236, %s237
      %p246 = scmp.eq.s32.totalorder %s22, 0
      %p247 = por %p245, %p246
      %p248 = scmp.ne.s32.totalorder %s236, %s237
      %p249 = scmp.eq.s32.totalorder %s23, 1
      %p250 = por %p248, %p249
      %p252 = scmp.ne.s32.totalorder %s237, %s251
      %p253 = scmp.eq.s32.totalorder %s23, 0
      %p254 = por %p252, %p253
      %s256 = sadd.s32 %s255, 1
      %p259 = scmp.eq.s32.totalorder %s17, 1
      %p260 = scmp.ne.s32.totalorder %s255, %s257
      %p261 = scmp.eq.s32.totalorder %s17, 0
      %p262 = por %p260, %p261
      %p263 = scmp.ne.s32.totalorder %s255, %s257
      %p264 = scmp.eq.s32.totalorder %s22, 1
      %p265 = por %p263, %p264
      %p266 = scmp.ne.s32.totalorder %s257, %s258
      %p267 = scmp.eq.s32.totalorder %s22, 0
      %p268 = por %p266, %p267
      %p269 = scmp.ne.s32.totalorder %s257, %s258
      %p270 = scmp.eq.s32.totalorder %s23, 1
      %p271 = por %p269, %p270
      %p273 = scmp.ne.s32.totalorder %s258, %s272
      %p274 = scmp.eq.s32.totalorder %s23, 0
      %p275 = por %p273, %p274
      %p276 = scmp.le.s32.totalorder 1, %s17
      %p277 = scmp.lt.s32.totalorder %s17, 3
      %p278 = pnand %p276, %p277
      %p279 = pneg %p278
      // Predicated region
      $region9: #{tpu_custom_call.1} parent=5 // pred_check
        _
      $region10: #{tpu_custom_call.1} parent=5 // pred_check_branch
        %281 = sbr.rel (%p278) target = $region12
      $region11: #{tpu_custom_call.1} parent=5 // pred_region
        %s282 = ssub.s32 %s17, 1
        // Predicated region
        $region13: #{tpu_custom_call.1} parent=11 // pred_check
          %p283 = pneg %p90
        $region14: #{tpu_custom_call.1} parent=11 // pred_check_branch
          %285 = sbr.rel (%p283) target = $region16
        $region15: #{tpu_custom_call.1} parent=11 // pred_region
          _
        $region16: #{tpu_custom_call.1} parent=11 // pred_fallthru
          _
        // Predicated region
        $region17: #{tpu_custom_call.1} parent=11 // pred_check
          %p286 = pneg %p111
        $region18: #{tpu_custom_call.1} parent=11 // pred_check_branch
          %288 = sbr.rel (%p286) target = $region20
        $region19: #{tpu_custom_call.1} parent=11 // pred_region
          _
        $region20: #{tpu_custom_call.1} parent=11 // pred_fallthru
          _
        // Predicated region
        $region21: #{tpu_custom_call.1} parent=11 // pred_check
          %p289 = pneg %p184
        $region22: #{tpu_custom_call.1} parent=11 // pred_check_branch
          %291 = sbr.rel (%p289) target = $region24
        $region23: #{tpu_custom_call.1} parent=11 // pred_region
          _
        $region24: #{tpu_custom_call.1} parent=11 // pred_fallthru
          _
        // Predicated region
        $region25: #{tpu_custom_call.1} parent=11 // pred_check
          %p292 = pneg %p205
        $region26: #{tpu_custom_call.1} parent=11 // pred_check_branch
          %294 = sbr.rel (%p292) target = $region28
        $region27: #{tpu_custom_call.1} parent=11 // pred_region
          _
        $region28: #{tpu_custom_call.1} parent=11 // pred_fallthru
          _
        // Predicated region
        $region29: #{tpu_custom_call.1} parent=11 // pred_check
          %p295 = pneg %p226
        $region30: #{tpu_custom_call.1} parent=11 // pred_check_branch
          %297 = sbr.rel (%p295) target = $region32
        $region31: #{tpu_custom_call.1} parent=11 // pred_region
          _
        $region32: #{tpu_custom_call.1} parent=11 // pred_fallthru
          _
        // Predicated region
        $region33: #{tpu_custom_call.1} parent=11 // pred_check
          %p298 = pneg %p247
        $region34: #{tpu_custom_call.1} parent=11 // pred_check_branch
          %300 = sbr.rel (%p298) target = $region36
        $region35: #{tpu_custom_call.1} parent=11 // pred_region
          _
        $region36: #{tpu_custom_call.1} parent=11 // pred_fallthru
          _
      $region12: #{tpu_custom_call.1} parent=5 // pred_fallthru
        _
      %p301 = scmp.lt.s32.totalorder %s17, 2
      // Predicated region
      $region37: #{tpu_custom_call.1} parent=5 // pred_check
        %p302 = pneg %p301
      $region38: #{tpu_custom_call.1} parent=5 // pred_check_branch
        %304 = sbr.rel (%p302) target = $region40
      $region39: #{tpu_custom_call.1} parent=5 // pred_region
        // Predicated region
        $region41: #{tpu_custom_call.1} parent=39 // pred_check
          %p305 = pneg %p37
        $region42: #{tpu_custom_call.1} parent=39 // pred_check_branch
          %307 = sbr.rel (%p305) target = $region44
        $region43: #{tpu_custom_call.1} parent=39 // pred_region
          %p308 = scmp.lt.s32.totalorder %s17, 1
          %s309 = scalar_select %p308, %s17, 1
          %s310 = scalar_lea.vmem %s0, %s309
        $region44: #{tpu_custom_call.1} parent=39 // pred_fallthru
          _
        // Predicated region
        $region45: #{tpu_custom_call.1} parent=39 // pred_check
          %p311 = pneg %p63
        $region46: #{tpu_custom_call.1} parent=39 // pred_check_branch
          %313 = sbr.rel (%p311) target = $region48
        $region47: #{tpu_custom_call.1} parent=39 // pred_region
          %s314 = smul.u32 16, %s17
          %p315 = scmp.lt.s32.totalorder %s314, 31
          %s316 = scalar_select %p315, %s314, 31
          %s317 = smul.addr %s316, 8
          %s318 = scalar_lea.vmem %s1, %s317
          %s319 = smul.u32 16, %s17
        $region48: #{tpu_custom_call.1} parent=39 // pred_fallthru
          _
        // Predicated region
        $region49: #{tpu_custom_call.1} parent=39 // pred_check
          %p320 = pneg %p131
        $region50: #{tpu_custom_call.1} parent=39 // pred_check_branch
          %322 = sbr.rel (%p320) target = $region52
        $region51: #{tpu_custom_call.1} parent=39 // pred_region
          %p323 = scmp.lt.s32.totalorder %s17, 1
          %s324 = scalar_select %p323, %s17, 1
          %s325 = smul.addr %s324, 4
          %s326 = scalar_lea.vmem %s4, %s325
        $region52: #{tpu_custom_call.1} parent=39 // pred_fallthru
          _
        // Predicated region
        $region53: #{tpu_custom_call.1} parent=39 // pred_check
          %p327 = pneg %p157
        $region54: #{tpu_custom_call.1} parent=39 // pred_check_branch
          %329 = sbr.rel (%p327) target = $region56
        $region55: #{tpu_custom_call.1} parent=39 // pred_region
          %p330 = scmp.lt.s32.totalorder %s17, 1
          %s331 = scalar_select %p330, %s17, 1
          %s332 = smul.addr %s331, 8
          %s333 = scalar_lea.vmem %s5, %s332
        $region56: #{tpu_custom_call.1} parent=39 // pred_fallthru
          _
      $region40: #{tpu_custom_call.1} parent=5 // pred_fallthru
        _
      %p334 = scmp.le.s32.totalorder 1, %s17
      %p335 = scmp.lt.s32.totalorder %s17, 3
      %p336 = pnand %p334, %p335
      %p337 = pneg %p336
      // Predicated region
      $region57: #{tpu_custom_call.1} parent=5 // pred_check
        _
      $region58: #{tpu_custom_call.1} parent=5 // pred_check_branch
        %339 = sbr.rel (%p336) target = $region60
      $region59: #{tpu_custom_call.1} parent=5 // pred_region
        %s340 = ssub.s32 %s17, 1
        %p341 = scmp.lt.s32.totalorder %s22, 1
        %s342 = scalar_select %p341, %s22, 1
        %s343 = scalar_lea.vmem %s0, %s342
        %p344 = pneg %p43
        %p345 = pneg %p40
        %s346 = smul.u32 16, %s22
        %p347 = scmp.lt.s32.totalorder %s346, 31
        %s348 = scalar_select %p347, %s346, 31
        %s349 = smul.addr %s348, 8
        %s350 = scalar_lea.vmem %s1, %s349
        %p351 = pneg %p69
        %p352 = pneg %p66
        %p353 = pneg %p90
        %p354 = pneg %p87
        %p355 = pneg %p111
        %p356 = pneg %p108
        %p357 = scmp.lt.s32.totalorder %s22, 1
        %s358 = scalar_select %p357, %s22, 1
        %s359 = smul.addr %s358, 4
        %s360 = scalar_lea.vmem %s4, %s359
        %p361 = pneg %p137
        %p362 = pneg %p134
        %p363 = scmp.lt.s32.totalorder %s22, 1
        %s364 = scalar_select %p363, %s22, 1
        %s365 = smul.addr %s364, 8
        %s366 = scalar_lea.vmem %s5, %s365
        %p367 = pneg %p163
        %p368 = pneg %p160
        %p369 = pneg %p184
        %p370 = pneg %p181
        %p371 = pneg %p205
        %p372 = pneg %p202
        %p373 = pneg %p226
        %p374 = pneg %p223
        %p375 = pneg %p247
        %p376 = pneg %p244
        %p377 = pneg %p268
        %p378 = pneg %p265
        %p379 = scmp.lt.s32.totalorder %s22, 1
        %s380 = scalar_select %p379, %s22, 1
        %s381 = scalar_lea.vmem %s0, %s380
        %s382 = smul.u32 16, %s22
        %p383 = scmp.lt.s32.totalorder %s382, 31
        %s384 = scalar_select %p383, %s382, 31
        %s385 = smul.addr %s384, 8
        %s386 = scalar_lea.vmem %s1, %s385
        %s387 = smul.u32 16, %s22
        %p388 = scmp.lt.s32.totalorder %s22, 1
        %s389 = scalar_select %p388, %s22, 1
        %s390 = smul.addr %s389, 4
        %s391 = scalar_lea.vmem %s4, %s390
        %p392 = scmp.lt.s32.totalorder %s22, 1
        %s393 = scalar_select %p392, %s22, 1
        %s394 = smul.addr %s393, 8
        %s395 = scalar_lea.vmem %s5, %s394
        %p397 = scmp.eq.s32.totalorder %s22, 0
        // Predicated region
        $region61: #{tpu_custom_call.1} parent=59 // pred_check
          %p398 = pneg %p397
        $region62: #{tpu_custom_call.1} parent=59 // pred_check_branch
          %400 = sbr.rel (%p398) target = $region64
        $region63: #{tpu_custom_call.1} parent=59 // pred_region
          %v401 = vld [vmem:[%s2] sm:$0xff]
          %v402 = vld [vmem:[%s2 + $0x8] sm:$0xff]
          %v403 = vld [vmem:[%s3] sm:$0x1]
          %v404 = vlaneseq
          %v405 = vshrl.u32 %v404, 7
          %v406 = vsub.s32 0, %v405
          %v407 = vrot.slane %v403, %v406
          %v408 = vmul.f32 %v407, %v401
          %v409 = vmul.f32 %v407, %v402
          %v410 = vld [vmem:[%s3 + $0x1] sm:$0x1]
          %v411 = vlaneseq
          %v412 = vshrl.u32 %v411, 7
          %v413 = vsub.s32 0, %v412
          %v414 = vrot.slane %v410, %v413
          %v415 = vmul.f32 %v414, %v401
          %v416 = vmul.f32 %v414, %v402
          %v417 = vld [vmem:[%s3 + $0x2] sm:$0x1]
          %v418 = vlaneseq
          %v419 = vshrl.u32 %v418, 7
          %v420 = vsub.s32 0, %v419
          %v421 = vrot.slane %v417, %v420
          %v422 = vmul.f32 %v421, %v401
          %v423 = vmul.f32 %v421, %v402
          %v424 = vld [vmem:[%s6] sm:$0xff]
          %v425 = vld [vmem:[%s6 + $0x8] sm:$0xff]
          %v426 = vld [vmem:[%s6 + $0x10] sm:$0xff]
          %v427 = vld [vmem:[%s6 + $0x18] sm:$0xff]
          %vm428 = vcmask 392192
          %v430 = vsel %vm428, %v424, 0
          %v433 = vsel %vm428, %v425, 0
          %v436 = vsel %vm428, %v426, 0
          %v439 = vsel %vm428, %v427, 0
          %441 = vmatprep.subr.mxu0 0.0
          %442 = vmatpush1.msra.mxu0 0.0
          %443 = vmatprep.subr.mxu0 0.0
          %444 = vmatpush1.msra.mxu0 0.0
          %445 = vmatprep.subr.mxu0 0.0
          %446 = vmatpush1.msra.mxu0 0.0
          %447 = vmatprep.subr.mxu0 0.0
          %448 = vmatpush1.msra.mxu0 0.0
          %449 = vmatprep.subr.mxu0 0.0
          %450 = vmatpush1.msra.mxu0 0.0
          %451 = vmatprep.subr.mxu0 0.0
          %452 = vmatpush1.msra.mxu0 0.0
          %453 = vmatprep.subr.mxu0 0.0
          %454 = vmatpush1.msra.mxu0 0.0
          %455 = vmatprep.subr.mxu0 0.0
          %456 = vmatpush1.msra.mxu0 0.0
          %457 = vmatprep.subr.mxu0 0.0
          %458 = vmatpush1.msra.mxu0 0.0
          %459 = vmatprep.subr.mxu0 0.0
          %460 = vmatpush1.msra.mxu0 0.0
          %461 = vmatprep.subr.mxu0 0.0
          %462 = vmatpush1.msra.mxu0 %v423
          %463 = vmatprep.subr.mxu0 0.0
          %464 = vmatpush1.msra.mxu0 %v422
          %465 = vmatprep.subr.mxu0 0.0
          %466 = vmatpush1.msra.mxu0 %v416
          %467 = vmatprep.subr.mxu0 0.0
          %468 = vmatpush1.msra.mxu0 %v415
          %469 = vmatprep.subr.mxu0 0.0
          %470 = vmatpush1.msra.mxu0 %v409
          %471 = vmatprep.subr.mxu0 0.0
          %472 = vmatpush1.msra.mxu0 %v408
          %473 = vmatprep.subr.mxu0 0.0
          %474 = vmatpush2.msra.mxu0 0.0
          %475 = vmatprep.subr.mxu0 0.0
          %476 = vmatpush2.msra.mxu0 0.0
          %477 = vmatprep.subr.mxu0 0.0
          %478 = vmatpush2.msra.mxu0 0.0
          %479 = vmatprep.subr.mxu0 0.0
          %480 = vmatpush2.msra.mxu0 0.0
          %481 = vmatprep.subr.mxu0 0.0
          %482 = vmatpush2.msra.mxu0 0.0
          %483 = vmatprep.subr.mxu0 0.0
          %484 = vmatpush2.msra.mxu0 0.0
          %485 = vmatprep.subr.mxu0 0.0
          %486 = vmatpush2.msra.mxu0 0.0
          %487 = vmatprep.subr.mxu0 0.0
          %488 = vmatpush2.msra.mxu0 0.0
          %489 = vmatprep.subr.mxu0 0.0
          %490 = vmatpush2.msra.mxu0 0.0
          %491 = vmatprep.subr.mxu0 0.0
          %492 = vmatpush2.msra.mxu0 0.0
          %493 = vmatprep.subr.mxu0 0.0
          %494 = vmatpush2.msra.mxu0 0.0
          %495 = vmatprep.subr.mxu0 0.0
          %496 = vmatpush2.msra.mxu0 0.0
          %497 = vmatprep.subr.mxu0 0.0
          %498 = vmatpush2.msra.mxu0 0.0
          %499 = vmatprep.subr.mxu0 0.0
          %500 = vmatpush2.msra.mxu0 0.0
          %501 = vmatprep.subr.mxu0 0.0
          %502 = vmatpush2.msra.mxu0 0.0
          %503 = vmatprep.subr.mxu0 0.0
          %504 = vmatpush2.msra.mxu0 0.0
          %505 = vmatprep.mubr.f32.mxu0 0.0
          %506 = vmatmul.mubr.f32.gmra.mxu0 %v430
          %v507 = vpop.f32.mrf.mxu0
          %v508 = vadd.f32 0.0, %v507
          %v509 = vpop.f32.mrf.mxu0
          %510 = vmatprep.mubr.f32.mxu0 0.0
          %511 = vmatmul.mubr.f32.gmra.mxu0 %v433
          %v512 = vpop.f32.mrf.mxu0
          %v513 = vadd.f32 0.0, %v512
          %v514 = vpop.f32.mrf.mxu0
          %515 = vmatprep.mubr.f32.mxu0 0.0
          %516 = vmatmul.mubr.f32.gmra.mxu0 %v436
          %v517 = vpop.f32.mrf.mxu0
          %v518 = vadd.f32 0.0, %v517
          %v519 = vpop.f32.mrf.mxu0
          %520 = vmatprep.mubr.f32.mxu0 0.0
          %521 = vmatmul.mubr.f32.gmra.mxu0 %v439
          %v522 = vpop.f32.mrf.mxu0
          %v523 = vadd.f32 0.0, %v522
          %v524 = vpop.f32.mrf.mxu0
          %525 = vdwg.mxu0
          %526 = vst [vmem:[#allocation3] sm:$0xff] %v508
          %527 = vst [vmem:[#allocation3 + $0x8] sm:$0xff] %v513
          %v528 = vpack.c.bf16 %v523, %v518
          %v530 = vunpack.c.l.b16 %v528
          %v531 = vunpack.c.h.b16 %v528
          %v532 = vpack.c.b16 %v530, %v530
          %v533 = vpack.c.b16 %v531, %v531
          %536 = vst [vmem:[#allocation2] sm:$0xf] %v532
          %537 = vst [vmem:[#allocation2 + $0x4] sm:$0xf] %v533
          %538 = vst [vmem:[#allocation4] sm:$0xff] 0.0
          %539 = vst [vmem:[#allocation4 + $0x8] sm:$0xff] 0.0
          %540 = vst [vmem:[#allocation4 + $0x10] sm:$0xff] 0.0
          %541 = vst [vmem:[#allocation4 + $0x18] sm:$0xff] 0.0
        $region64: #{tpu_custom_call.1} parent=59 // pred_fallthru
          _
        %v542 = vld [vmem:[%s381] sm:$0x1]
        %v543 = vlaneseq
        %v544 = vshrl.u32 %v543, 7
        %v545 = vadd.s32 %v544, 8
        %v546 = vadd.s32 %v544, 16
        %v547 = vadd.s32 %v544, 24
        %v548 = vadd.s32 %v544, 32
        %v549 = vadd.s32 %v544, 40
        %v550 = vadd.s32 %v544, 48
        %v551 = vadd.s32 %v544, 56
        %v552 = vadd.s32 %v544, 64
        %v553 = vadd.s32 %v544, 72
        %v554 = vadd.s32 %v544, 80
        %v555 = vadd.s32 %v544, 88
        %v556 = vadd.s32 %v544, 96
        %v557 = vadd.s32 %v544, 104
        %v558 = vadd.s32 %v544, 112
        %v559 = vadd.s32 %v544, 120
        %v560 = vlaneseq
        %v561 = vshrl.u32 %v560, 7
        %v562 = vsub.s32 0, %v561
        %v563 = vrot.slane %v542, %v562
        %vm564 = vcmp.eq.s32.totalorder %v544, %v563
        %vm565 = vcmp.eq.s32.totalorder %v545, %v563
        %vm566 = vcmp.eq.s32.totalorder %v546, %v563
        %vm567 = vcmp.eq.s32.totalorder %v547, %v563
        %vm568 = vcmp.eq.s32.totalorder %v548, %v563
        %vm569 = vcmp.eq.s32.totalorder %v549, %v563
        %vm570 = vcmp.eq.s32.totalorder %v550, %v563
        %vm571 = vcmp.eq.s32.totalorder %v551, %v563
        %vm572 = vcmp.eq.s32.totalorder %v552, %v563
        %vm573 = vcmp.eq.s32.totalorder %v553, %v563
        %vm574 = vcmp.eq.s32.totalorder %v554, %v563
        %vm575 = vcmp.eq.s32.totalorder %v555, %v563
        %vm576 = vcmp.eq.s32.totalorder %v556, %v563
        %vm577 = vcmp.eq.s32.totalorder %v557, %v563
        %vm578 = vcmp.eq.s32.totalorder %v558, %v563
        %vm579 = vcmp.eq.s32.totalorder %v559, %v563
        %v580 = vsel %vm564, 1, 0
        %v581 = vsel %vm565, 1, 0
        %v582 = vsel %vm566, 1, 0
        %v583 = vsel %vm567, 1, 0
        %v584 = vsel %vm568, 1, 0
        %v585 = vsel %vm569, 1, 0
        %v586 = vsel %vm570, 1, 0
        %v587 = vsel %vm571, 1, 0
        %v588 = vsel %vm572, 1, 0
        %v589 = vsel %vm573, 1, 0
        %v590 = vsel %vm574, 1, 0
        %v591 = vsel %vm575, 1, 0
        %v592 = vsel %vm576, 1, 0
        %v593 = vsel %vm577, 1, 0
        %v594 = vsel %vm578, 1, 0
        %v595 = vsel %vm579, 1, 0
        %v596 = vcvt.s32.f32 %v580
        %v597 = vcvt.s32.f32 %v581
        %v598 = vcvt.s32.f32 %v582
        %v599 = vcvt.s32.f32 %v583
        %v600 = vcvt.s32.f32 %v584
        %v601 = vcvt.s32.f32 %v585
        %v602 = vcvt.s32.f32 %v586
        %v603 = vcvt.s32.f32 %v587
        %v604 = vcvt.s32.f32 %v588
        %v605 = vcvt.s32.f32 %v589
        %v606 = vcvt.s32.f32 %v590
        %v607 = vcvt.s32.f32 %v591
        %v608 = vcvt.s32.f32 %v592
        %v609 = vcvt.s32.f32 %v593
        %v610 = vcvt.s32.f32 %v594
        %v611 = vcvt.s32.f32 %v595
        %v612 = vpack.c.bf16 %v597, %v596
        %v613 = vpack.c.bf16 %v599, %v598
        %v614 = vpack.c.bf16 %v601, %v600
        %v615 = vpack.c.bf16 %v603, %v602
        %v616 = vpack.c.bf16 %v605, %v604
        %v617 = vpack.c.bf16 %v607, %v606
        %v618 = vpack.c.bf16 %v609, %v608
        %v619 = vpack.c.bf16 %v611, %v610
        %v620 = vld [vmem:[#allocation2] sm:$0xf]
        %v621 = vld [vmem:[#allocation2 + $0x4] sm:$0xf]
        %v624 = vunpack.c.l.b16 %v620
        %v625 = vunpack.c.l.b16 %v621
        %v626 = vpack.c.b16 %v625, %v624
        %628 = vmatprep.subr.bf16.mxu0 0
        %629 = vmatpush1.bf16.msra.mxu0 %v619
        %630 = vmatprep.subr.bf16.mxu0 0
        %631 = vmatpush1.bf16.msra.mxu0 %v618
        %632 = vmatprep.subr.bf16.mxu0 0
        %633 = vmatpush1.bf16.msra.mxu0 %v617
        %634 = vmatprep.subr.bf16.mxu0 0
        %635 = vmatpush1.bf16.msra.mxu0 %v616
        %636 = vmatprep.subr.bf16.mxu0 0
        %637 = vmatpush1.bf16.msra.mxu0 %v615
        %638 = vmatprep.subr.bf16.mxu0 0
        %639 = vmatpush1.bf16.msra.mxu0 %v614
        %640 = vmatprep.subr.bf16.mxu0 0
        %641 = vmatpush1.bf16.msra.mxu0 %v613
        %642 = vmatprep.subr.bf16.mxu0 0
        %643 = vmatpush1.bf16.msra.mxu0 %v612
        %644 = vmatprep.subr.bf16.mxu0 0
        %645 = vmatpush2.bf16.msra.mxu0 0
        %646 = vmatprep.subr.bf16.mxu0 0
        %647 = vmatpush2.bf16.msra.mxu0 0
        %648 = vmatprep.subr.bf16.mxu0 0
        %649 = vmatpush2.bf16.msra.mxu0 0
        %650 = vmatprep.subr.bf16.mxu0 0
        %651 = vmatpush2.bf16.msra.mxu0 0
        %652 = vmatprep.subr.bf16.mxu0 0
        %653 = vmatpush2.bf16.msra.mxu0 0
        %654 = vmatprep.subr.bf16.mxu0 0
        %655 = vmatpush2.bf16.msra.mxu0 0
        %656 = vmatprep.subr.bf16.mxu0 0
        %657 = vmatpush2.bf16.msra.mxu0 0
        %658 = vmatprep.subr.bf16.mxu0 0
        %659 = vmatpush2.bf16.msra.mxu0 0
        %660 = vmatprep.mubr.bf16.mxu0 0
        %661 = vmatmul.mubr.bf16.gmra.mxu0 %v626
        %v662 = vpop.f32.mrf.mxu0
        %v663 = vadd.f32 0.0, %v662
        %v664 = vpop.f32.mrf.mxu0
        %v665 = vpop.f32.mrf.mxu0
        %v666 = vadd.f32 0.0, %v665
        %v667 = vpop.f32.mrf.mxu0
        %668 = vdwg.mxu0
        %v669 = vld [vmem:[%s8] sm:$0xff]
        %v670 = vld [vmem:[%s395] sm:$0xff]
        %vm671 = vcmask 64512
        %v673 = vsel %vm671, %v669, 0
        %675 = vmatprep.subr.mxu0 0.0
        %676 = vmatpush1.msra.mxu0 0.0
        %677 = vmatprep.subr.mxu0 0.0
        %678 = vmatpush1.msra.mxu0 0.0
        %679 = vmatprep.subr.mxu0 0.0
        %680 = vmatpush1.msra.mxu0 0.0
        %681 = vmatprep.subr.mxu0 0.0
        %682 = vmatpush1.msra.mxu0 0.0
        %683 = vmatprep.subr.mxu0 0.0
        %684 = vmatpush1.msra.mxu0 0.0
        %685 = vmatprep.subr.mxu0 0.0
        %686 = vmatpush1.msra.mxu0 0.0
        %687 = vmatprep.subr.mxu0 0.0
        %688 = vmatpush1.msra.mxu0 0.0
        %689 = vmatprep.subr.mxu0 0.0
        %690 = vmatpush1.msra.mxu0 0.0
        %691 = vmatprep.subr.mxu0 0.0
        %692 = vmatpush1.msra.mxu0 0.0
        %693 = vmatprep.subr.mxu0 0.0
        %694 = vmatpush1.msra.mxu0 0.0
        %695 = vmatprep.subr.mxu0 0.0
        %696 = vmatpush1.msra.mxu0 0.0
        %697 = vmatprep.subr.mxu0 0.0
        %698 = vmatpush1.msra.mxu0 0.0
        %699 = vmatprep.subr.mxu0 0.0
        %700 = vmatpush1.msra.mxu0 0.0
        %701 = vmatprep.subr.mxu0 0.0
        %702 = vmatpush1.msra.mxu0 0.0
        %703 = vmatprep.subr.mxu0 0.0
        %704 = vmatpush1.msra.mxu0 0.0
        %705 = vmatprep.subr.mxu0 0.0
        %706 = vmatpush1.msra.mxu0 %v670
        %707 = vmatprep.subr.mxu0 0.0
        %708 = vmatpush2.msra.mxu0 0.0
        %709 = vmatprep.subr.mxu0 0.0
        %710 = vmatpush2.msra.mxu0 0.0
        %711 = vmatprep.subr.mxu0 0.0
        %712 = vmatpush2.msra.mxu0 0.0
        %713 = vmatprep.subr.mxu0 0.0
        %714 = vmatpush2.msra.mxu0 0.0
        %715 = vmatprep.subr.mxu0 0.0
        %716 = vmatpush2.msra.mxu0 0.0
        %717 = vmatprep.subr.mxu0 0.0
        %718 = vmatpush2.msra.mxu0 0.0
        %719 = vmatprep.subr.mxu0 0.0
        %720 = vmatpush2.msra.mxu0 0.0
        %721 = vmatprep.subr.mxu0 0.0
        %722 = vmatpush2.msra.mxu0 0.0
        %723 = vmatprep.subr.mxu0 0.0
        %724 = vmatpush2.msra.mxu0 0.0
        %725 = vmatprep.subr.mxu0 0.0
        %726 = vmatpush2.msra.mxu0 0.0
        %727 = vmatprep.subr.mxu0 0.0
        %728 = vmatpush2.msra.mxu0 0.0
        %729 = vmatprep.subr.mxu0 0.0
        %730 = vmatpush2.msra.mxu0 0.0
        %731 = vmatprep.subr.mxu0 0.0
        %732 = vmatpush2.msra.mxu0 0.0
        %733 = vmatprep.subr.mxu0 0.0
        %734 = vmatpush2.msra.mxu0 0.0
        %735 = vmatprep.subr.mxu0 0.0
        %736 = vmatpush2.msra.mxu0 0.0
        %737 = vmatprep.subr.mxu0 0.0
        %738 = vmatpush2.msra.mxu0 0.0
        %739 = vmatprep.mubr.f32.mxu0 0.0
        %740 = vmatmul.mubr.f32.gmra.mxu0 %v673
        %v741 = vpop.f32.mrf.mxu0
        %v742 = vadd.f32 0.0, %v741
        %v743 = vpop.f32.mrf.mxu0
        %744 = vdwg.mxu0
        %v745 = vxor.u32 %v742, 2147483648
        %v746 = vmul.f32 %v745, 1.442695
        %v747 = vpow.pop %v746
        %v748 = vadd.f32 %v747, 1.0
        %v749 = vrcp.pop %v748
        %v750 = vmul.f32 1.0, %v749
        %v751 = vmul.f32 %v742, %v750
        %v752 = vld [vmem:[%s9] sm:$0xff]
        %v753 = vld [vmem:[%s9 + $0x8] sm:$0xff]
        %v755 = vsel %vm671, %v752, 0
        %v758 = vsel %vm671, %v753, 0
        %760 = vmatprep.subr.mxu0 0.0
        %761 = vmatpush1.msra.mxu0 0.0
        %762 = vmatprep.subr.mxu0 0.0
        %763 = vmatpush1.msra.mxu0 0.0
        %764 = vmatprep.subr.mxu0 0.0
        %765 = vmatpush1.msra.mxu0 0.0
        %766 = vmatprep.subr.mxu0 0.0
        %767 = vmatpush1.msra.mxu0 0.0
        %768 = vmatprep.subr.mxu0 0.0
        %769 = vmatpush1.msra.mxu0 0.0
        %770 = vmatprep.subr.mxu0 0.0
        %771 = vmatpush1.msra.mxu0 0.0
        %772 = vmatprep.subr.mxu0 0.0
        %773 = vmatpush1.msra.mxu0 0.0
        %774 = vmatprep.subr.mxu0 0.0
        %775 = vmatpush1.msra.mxu0 0.0
        %776 = vmatprep.subr.mxu0 0.0
        %777 = vmatpush1.msra.mxu0 0.0
        %778 = vmatprep.subr.mxu0 0.0
        %779 = vmatpush1.msra.mxu0 0.0
        %780 = vmatprep.subr.mxu0 0.0
        %781 = vmatpush1.msra.mxu0 0.0
        %782 = vmatprep.subr.mxu0 0.0
        %783 = vmatpush1.msra.mxu0 0.0
        %784 = vmatprep.subr.mxu0 0.0
        %785 = vmatpush1.msra.mxu0 0.0
        %786 = vmatprep.subr.mxu0 0.0
        %787 = vmatpush1.msra.mxu0 0.0
        %788 = vmatprep.subr.mxu0 0.0
        %789 = vmatpush1.msra.mxu0 0.0
        %790 = vmatprep.subr.mxu0 0.0
        %791 = vmatpush1.msra.mxu0 %v751
        %792 = vmatprep.subr.mxu0 0.0
        %793 = vmatpush2.msra.mxu0 0.0
        %794 = vmatprep.subr.mxu0 0.0
        %795 = vmatpush2.msra.mxu0 0.0
        %796 = vmatprep.subr.mxu0 0.0
        %797 = vmatpush2.msra.mxu0 0.0
        %798 = vmatprep.subr.mxu0 0.0
        %799 = vmatpush2.msra.mxu0 0.0
        %800 = vmatprep.subr.mxu0 0.0
        %801 = vmatpush2.msra.mxu0 0.0
        %802 = vmatprep.subr.mxu0 0.0
        %803 = vmatpush2.msra.mxu0 0.0
        %804 = vmatprep.subr.mxu0 0.0
        %805 = vmatpush2.msra.mxu0 0.0
        %806 = vmatprep.subr.mxu0 0.0
        %807 = vmatpush2.msra.mxu0 0.0
        %808 = vmatprep.subr.mxu0 0.0
        %809 = vmatpush2.msra.mxu0 0.0
        %810 = vmatprep.subr.mxu0 0.0
        %811 = vmatpush2.msra.mxu0 0.0
        %812 = vmatprep.subr.mxu0 0.0
        %813 = vmatpush2.msra.mxu0 0.0
        %814 = vmatprep.subr.mxu0 0.0
        %815 = vmatpush2.msra.mxu0 0.0
        %816 = vmatprep.subr.mxu0 0.0
        %817 = vmatpush2.msra.mxu0 0.0
        %818 = vmatprep.subr.mxu0 0.0
        %819 = vmatpush2.msra.mxu0 0.0
        %820 = vmatprep.subr.mxu0 0.0
        %821 = vmatpush2.msra.mxu0 0.0
        %822 = vmatprep.subr.mxu0 0.0
        %823 = vmatpush2.msra.mxu0 0.0
        %824 = vmatprep.mubr.f32.mxu0 0.0
        %825 = vmatmul.mubr.f32.gmra.mxu0 %v755
        %v826 = vpop.f32.mrf.mxu0
        %v827 = vadd.f32 0.0, %v826
        %v828 = vpop.f32.mrf.mxu0
        %829 = vmatprep.mubr.f32.mxu0 0.0
        %830 = vmatmul.mubr.f32.gmra.mxu0 %v758
        %v831 = vpop.f32.mrf.mxu0
        %v832 = vadd.f32 0.0, %v831
        %v833 = vpop.f32.mrf.mxu0
        %834 = vdwg.mxu0
        %v835 = vld [vmem:[%s391] sm:$0xf]
        %v836 = vmul.f32 %v827, %v663
        %v837 = vlaneseq
        %v838 = vshrl.u32 %v837, 7
        %v839 = vsub.s32 0, %v838
        %v840 = vrot.slane %v835, %v839
        %v841 = vmul.f32 %v836, %v840
        %v842 = vlaneseq
        %v843 = vshrl.u32 %v842, 7
        %v844 = vsub.s32 1, %v843
        %v845 = vrot.slane %v835, %v844
        %v846 = vmul.f32 %v663, %v845
        %v847 = vlaneseq
        %v848 = vshrl.u32 %v847, 7
        %v849 = vsub.s32 2, %v848
        %v850 = vrot.slane %v835, %v849
        %v851 = vmul.f32 %v666, %v850
        %v853 = vrot.slane %v851, 4
        %v855 = vadd.f32 %v846, %v853
        %v856 = vlaneseq
        %v857 = vshrl.u32 %v856, 7
        %v858 = vsub.s32 3, %v857
        %v859 = vrot.slane %v835, %v858
        %v860 = vmul.f32 %v666, %v859
        %v861 = vadd.f32 %v855, %v860
        %v862 = vmul.f32 %v827, %v861
        %v863 = vmul.f32 %v862, 0.57735026
        %v864 = vmul.f32 %v832, %v663
        %v865 = vmul.f32 %v864, %v845
        %v866 = vmul.f32 %v864, %v850
        %v867 = vmul.f32 %v864, %v859
        %v868 = vmul.f32 %v864, %v840
        %v870 = vrot.slane %v666, 4
        %v872 = vmul.f32 %v832, %v870
        %v873 = vmul.f32 %v872, %v840
        %v874 = vmul.f32 %v832, %v666
        %v875 = vmul.f32 %v874, %v840
        %v877 = vrot.slane %v866, 4
        %v880 = vrot.slane %v873, 4
        %vm882 = vcmask 1043456
        %v883 = vsel %vm882, %v841, %v863
        %v884 = vsel %vm882, %v865, %v877
        %v885 = vsel %vm882, %v867, %v868
        %v886 = vsel %vm882, %v880, %v875
        %v887 = vld [vmem:[%s386] sm:$0xff]
        %v888 = vld [vmem:[%s386 + $0x8] sm:$0xff]
        %v889 = vld [vmem:[%s386 + $0x10] sm:$0xff]
        %v890 = vld [vmem:[%s386 + $0x18] sm:$0xff]
        %v891 = vld [vmem:[%s386 + $0x20] sm:$0xff]
        %v892 = vld [vmem:[%s386 + $0x28] sm:$0xff]
        %v893 = vld [vmem:[%s386 + $0x30] sm:$0xff]
        %v894 = vld [vmem:[%s386 + $0x38] sm:$0xff]
        %v895 = vld [vmem:[%s386 + $0x40] sm:$0xff]
        %v896 = vld [vmem:[%s386 + $0x48] sm:$0xff]
        %v897 = vld [vmem:[%s386 + $0x50] sm:$0xff]
        %v898 = vld [vmem:[%s386 + $0x58] sm:$0xff]
        %v899 = vld [vmem:[%s386 + $0x60] sm:$0xff]
        %v900 = vld [vmem:[%s386 + $0x68] sm:$0xff]
        %v901 = vld [vmem:[%s386 + $0x70] sm:$0xff]
        %v902 = vld [vmem:[%s386 + $0x78] sm:$0xff]
        %v903 = vlaneseq
        %v904 = vand.u32 %v903, 127
        %905 = vset.pattern.permute.xlu0 0
        %906 = vperm.xlu0 %905, %v887
        %v907 = vpop.permute.xlu0 %906
        %908 = vset.pattern.permute.xlu0 0
        %909 = vperm.xlu0 %908, %v888
        %v910 = vpop.permute.xlu0 %909
        %911 = vset.pattern.permute.xlu0 0
        %912 = vperm.xlu0 %911, %v889
        %v913 = vpop.permute.xlu0 %912
        %914 = vset.pattern.permute.xlu0 0
        %915 = vperm.xlu0 %914, %v890
        %v916 = vpop.permute.xlu0 %915
        %917 = vset.pattern.permute.xlu0 0
        %918 = vperm.xlu0 %917, %v891
        %v919 = vpop.permute.xlu0 %918
        %920 = vset.pattern.permute.xlu0 0
        %921 = vperm.xlu0 %920, %v892
        %v922 = vpop.permute.xlu0 %921
        %923 = vset.pattern.permute.xlu0 0
        %924 = vperm.xlu0 %923, %v893
        %v925 = vpop.permute.xlu0 %924
        %926 = vset.pattern.permute.xlu0 0
        %927 = vperm.xlu0 %926, %v894
        %v928 = vpop.permute.xlu0 %927
        %929 = vset.pattern.permute.xlu0 0
        %930 = vperm.xlu0 %929, %v895
        %v931 = vpop.permute.xlu0 %930
        %932 = vset.pattern.permute.xlu0 0
        %933 = vperm.xlu0 %932, %v896
        %v934 = vpop.permute.xlu0 %933
        %935 = vset.pattern.permute.xlu0 0
        %936 = vperm.xlu0 %935, %v897
        %v937 = vpop.permute.xlu0 %936
        %938 = vset.pattern.permute.xlu0 0
        %939 = vperm.xlu0 %938, %v898
        %v940 = vpop.permute.xlu0 %939
        %941 = vset.pattern.permute.xlu0 0
        %942 = vperm.xlu0 %941, %v899
        %v943 = vpop.permute.xlu0 %942
        %944 = vset.pattern.permute.xlu0 0
        %945 = vperm.xlu0 %944, %v900
        %v946 = vpop.permute.xlu0 %945
        %947 = vset.pattern.permute.xlu0 0
        %948 = vperm.xlu0 %947, %v901
        %v949 = vpop.permute.xlu0 %948
        %950 = vset.pattern.permute.xlu0 0
        %951 = vperm.xlu0 %950, %v902
        %v952 = vpop.permute.xlu0 %951
        %vm953 = vcmp.eq.s32.totalorder %v904, %v907
        %vm954 = vcmp.eq.s32.totalorder %v904, %v910
        %vm955 = vcmp.eq.s32.totalorder %v904, %v913
        %vm956 = vcmp.eq.s32.totalorder %v904, %v916
        %vm957 = vcmp.eq.s32.totalorder %v904, %v919
        %vm958 = vcmp.eq.s32.totalorder %v904, %v922
        %vm959 = vcmp.eq.s32.totalorder %v904, %v925
        %vm960 = vcmp.eq.s32.totalorder %v904, %v928
        %vm961 = vcmp.eq.s32.totalorder %v904, %v931
        %vm962 = vcmp.eq.s32.totalorder %v904, %v934
        %vm963 = vcmp.eq.s32.totalorder %v904, %v937
        %vm964 = vcmp.eq.s32.totalorder %v904, %v940
        %vm965 = vcmp.eq.s32.totalorder %v904, %v943
        %vm966 = vcmp.eq.s32.totalorder %v904, %v946
        %vm967 = vcmp.eq.s32.totalorder %v904, %v949
        %vm968 = vcmp.eq.s32.totalorder %v904, %v952
        %v969 = vsel %vm953, 1, 0
        %v970 = vsel %vm954, 1, 0
        %v971 = vsel %vm955, 1, 0
        %v972 = vsel %vm956, 1, 0
        %v973 = vsel %vm957, 1, 0
        %v974 = vsel %vm958, 1, 0
        %v975 = vsel %vm959, 1, 0
        %v976 = vsel %vm960, 1, 0
        %v977 = vsel %vm961, 1, 0
        %v978 = vsel %vm962, 1, 0
        %v979 = vsel %vm963, 1, 0
        %v980 = vsel %vm964, 1, 0
        %v981 = vsel %vm965, 1, 0
        %v982 = vsel %vm966, 1, 0
        %v983 = vsel %vm967, 1, 0
        %v984 = vsel %vm968, 1, 0
        %v985 = vcvt.s32.f32 %v969
        %v986 = vcvt.s32.f32 %v970
        %v987 = vcvt.s32.f32 %v971
        %v988 = vcvt.s32.f32 %v972
        %v989 = vcvt.s32.f32 %v973
        %v990 = vcvt.s32.f32 %v974
        %v991 = vcvt.s32.f32 %v975
        %v992 = vcvt.s32.f32 %v976
        %v993 = vcvt.s32.f32 %v977
        %v994 = vcvt.s32.f32 %v978
        %v995 = vcvt.s32.f32 %v979
        %v996 = vcvt.s32.f32 %v980
        %v997 = vcvt.s32.f32 %v981
        %v998 = vcvt.s32.f32 %v982
        %v999 = vcvt.s32.f32 %v983
        %v1000 = vcvt.s32.f32 %v984
        %v1001 = vpack.c.bf16 %v986, %v985
        %v1002 = vpack.c.bf16 %v988, %v987
        %v1003 = vpack.c.bf16 %v990, %v989
        %v1004 = vpack.c.bf16 %v992, %v991
        %v1005 = vpack.c.bf16 %v994, %v993
        %v1006 = vpack.c.bf16 %v996, %v995
        %v1007 = vpack.c.bf16 %v998, %v997
        %v1008 = vpack.c.bf16 %v1000, %v999
        %v1009 = vld [vmem:[#allocation4] sm:$0xff]
        %v1010 = vld [vmem:[#allocation4 + $0x8] sm:$0xff]
        %v1011 = vld [vmem:[#allocation4 + $0x10] sm:$0xff]
        %v1012 = vld [vmem:[#allocation4 + $0x18] sm:$0xff]
        %v1013 = vpack.c.bf16 %v884, %v883
        %v1014 = vpack.c.bf16 %v886, %v885
        %1015 = vmatprep.subr.bf16.mxu0 0
        %1016 = vmatpush1.bf16.msra.mxu0 %v1008
        %1017 = vmatprep.subr.bf16.mxu0 0
        %1018 = vmatpush1.bf16.msra.mxu0 %v1007
        %1019 = vmatprep.subr.bf16.mxu0 0
        %1020 = vmatpush1.bf16.msra.mxu0 %v1006
        %1021 = vmatprep.subr.bf16.mxu0 0
        %1022 = vmatpush1.bf16.msra.mxu0 %v1005
        %1023 = vmatprep.subr.bf16.mxu0 0
        %1024 = vmatpush1.bf16.msra.mxu0 %v1004
        %1025 = vmatprep.subr.bf16.mxu0 0
        %1026 = vmatpush1.bf16.msra.mxu0 %v1003
        %1027 = vmatprep.subr.bf16.mxu0 0
        %1028 = vmatpush1.bf16.msra.mxu0 %v1002
        %1029 = vmatprep.subr.bf16.mxu0 0
        %1030 = vmatpush1.bf16.msra.mxu0 %v1001
        %1031 = vmatprep.subr.bf16.mxu0 0
        %1032 = vmatpush2.bf16.msra.mxu0 0
        %1033 = vmatprep.subr.bf16.mxu0 0
        %1034 = vmatpush2.bf16.msra.mxu0 0
        %1035 = vmatprep.subr.bf16.mxu0 0
        %1036 = vmatpush2.bf16.msra.mxu0 0
        %1037 = vmatprep.subr.bf16.mxu0 0
        %1038 = vmatpush2.bf16.msra.mxu0 0
        %1039 = vmatprep.subr.bf16.mxu0 0
        %1040 = vmatpush2.bf16.msra.mxu0 0
        %1041 = vmatprep.subr.bf16.mxu0 0
        %1042 = vmatpush2.bf16.msra.mxu0 0
        %1043 = vmatprep.subr.bf16.mxu0 0
        %1044 = vmatpush2.bf16.msra.mxu0 0
        %1045 = vmatprep.subr.bf16.mxu0 0
        %1046 = vmatpush2.bf16.msra.mxu0 0
        %1047 = vmatprep.mubr.bf16.mxu0 0
        %1048 = vmatmul.mubr.bf16.gmra.mxu0 %v1013
        %v1049 = vpop.f32.mrf.mxu0
        %v1050 = vadd.f32 0.0, %v1049
        %v1051 = vpop.f32.mrf.mxu0
        %v1052 = vpop.f32.mrf.mxu0
        %v1053 = vadd.f32 0.0, %v1052
        %v1054 = vpop.f32.mrf.mxu0
        %1055 = vmatprep.mubr.bf16.mxu0 0
        %1056 = vmatmul.mubr.bf16.gmra.mxu0 %v1014
        %v1057 = vpop.f32.mrf.mxu0
        %v1058 = vadd.f32 0.0, %v1057
        %v1059 = vpop.f32.mrf.mxu0
        %v1060 = vpop.f32.mrf.mxu0
        %v1061 = vadd.f32 0.0, %v1060
        %v1062 = vpop.f32.mrf.mxu0
        %1063 = vdwg.mxu0
        %v1064 = vadd.f32 %v1009, %v1050
        %v1065 = vadd.f32 %v1010, %v1053
        %v1066 = vadd.f32 %v1011, %v1058
        %v1067 = vadd.f32 %v1012, %v1061
        %1068 = vst [vmem:[#allocation4] sm:$0xff] %v1064
        %1069 = vst [vmem:[#allocation4 + $0x8] sm:$0xff] %v1065
        %1070 = vst [vmem:[#allocation4 + $0x10] sm:$0xff] %v1066
        %1071 = vst [vmem:[#allocation4 + $0x18] sm:$0xff] %v1067
        %p1072 = scmp.eq.s32.totalorder %s22, 1
        // Predicated region
        $region65: #{tpu_custom_call.1} parent=59 // pred_check
          %p1073 = pneg %p1072
        $region66: #{tpu_custom_call.1} parent=59 // pred_check_branch
          %1075 = sbr.rel (%p1073) target = $region68
        $region67: #{tpu_custom_call.1} parent=59 // pred_region
          %v1076 = vld [vmem:[#allocation4] sm:$0xff]
          %v1077 = vld [vmem:[#allocation4 + $0x8] sm:$0xff]
          %v1078 = vld [vmem:[#allocation4 + $0x10] sm:$0xff]
          %v1079 = vld [vmem:[#allocation4 + $0x18] sm:$0xff]
          %v1080 = vld [vmem:[%s3] sm:$0x1]
          %v1081 = vlaneseq
          %v1082 = vshrl.u32 %v1081, 7
          %v1083 = vsub.s32 0, %v1082
          %v1084 = vrot.slane %v1080, %v1083
          %v1085 = vmul.f32 %v1084, %v1076
          %v1086 = vmul.f32 %v1084, %v1077
          %v1087 = vmul.f32 %v1084, %v1078
          %v1088 = vmul.f32 %v1084, %v1079
          %v1089 = vld [vmem:[%s3 + $0x1] sm:$0x1]
          %v1090 = vlaneseq
          %v1091 = vshrl.u32 %v1090, 7
          %v1092 = vsub.s32 0, %v1091
          %v1093 = vrot.slane %v1089, %v1092
          %v1094 = vmul.f32 %v1093, %v1076
          %v1095 = vmul.f32 %v1093, %v1077
          %v1096 = vmul.f32 %v1093, %v1078
          %v1097 = vmul.f32 %v1093, %v1079
          %v1098 = vld [vmem:[%s3 + $0x2] sm:$0x1]
          %v1099 = vlaneseq
          %v1100 = vshrl.u32 %v1099, 7
          %v1101 = vsub.s32 0, %v1100
          %v1102 = vrot.slane %v1098, %v1101
          %v1103 = vmul.f32 %v1102, %v1076
          %v1104 = vmul.f32 %v1102, %v1077
          %v1105 = vmul.f32 %v1102, %v1078
          %v1106 = vmul.f32 %v1102, %v1079
          %v1107 = vld [vmem:[%s7] sm:$0xff]
          %v1108 = vld [vmem:[%s7 + $0x8] sm:$0xff]
          %v1109 = vld [vmem:[%s7 + $0x10] sm:$0x1]
          %vm1110 = vcmask 785408
          %v1112 = vsel %vm1110, %v1107, 0
          %v1115 = vsel %vm1110, %v1108, 0
          %v1118 = vsel %vm1110, %v1109, 0
          %1120 = vmatprep.subr.mxu0 0.0
          %1121 = vmatpush1.msra.mxu0 0.0
          %1122 = vmatprep.subr.mxu0 0.0
          %1123 = vmatpush1.msra.mxu0 0.0
          %1124 = vmatprep.subr.mxu0 0.0
          %1125 = vmatpush1.msra.mxu0 0.0
          %1126 = vmatprep.subr.mxu0 0.0
          %1127 = vmatpush1.msra.mxu0 0.0
          %1128 = vmatprep.subr.mxu0 0.0
          %1129 = vmatpush1.msra.mxu0 %v1106
          %1130 = vmatprep.subr.mxu0 0.0
          %1131 = vmatpush1.msra.mxu0 %v1105
          %1132 = vmatprep.subr.mxu0 0.0
          %1133 = vmatpush1.msra.mxu0 %v1104
          %1134 = vmatprep.subr.mxu0 0.0
          %1135 = vmatpush1.msra.mxu0 %v1103
          %1136 = vmatprep.subr.mxu0 0.0
          %1137 = vmatpush1.msra.mxu0 %v1097
          %1138 = vmatprep.subr.mxu0 0.0
          %1139 = vmatpush1.msra.mxu0 %v1096
          %1140 = vmatprep.subr.mxu0 0.0
          %1141 = vmatpush1.msra.mxu0 %v1095
          %1142 = vmatprep.subr.mxu0 0.0
          %1143 = vmatpush1.msra.mxu0 %v1094
          %1144 = vmatprep.subr.mxu0 0.0
          %1145 = vmatpush1.msra.mxu0 %v1088
          %1146 = vmatprep.subr.mxu0 0.0
          %1147 = vmatpush1.msra.mxu0 %v1087
          %1148 = vmatprep.subr.mxu0 0.0
          %1149 = vmatpush1.msra.mxu0 %v1086
          %1150 = vmatprep.subr.mxu0 0.0
          %1151 = vmatpush1.msra.mxu0 %v1085
          %1152 = vmatprep.subr.mxu0 0.0
          %1153 = vmatpush2.msra.mxu0 0.0
          %1154 = vmatprep.subr.mxu0 0.0
          %1155 = vmatpush2.msra.mxu0 0.0
          %1156 = vmatprep.subr.mxu0 0.0
          %1157 = vmatpush2.msra.mxu0 0.0
          %1158 = vmatprep.subr.mxu0 0.0
          %1159 = vmatpush2.msra.mxu0 0.0
          %1160 = vmatprep.subr.mxu0 0.0
          %1161 = vmatpush2.msra.mxu0 0.0
          %1162 = vmatprep.subr.mxu0 0.0
          %1163 = vmatpush2.msra.mxu0 0.0
          %1164 = vmatprep.subr.mxu0 0.0
          %1165 = vmatpush2.msra.mxu0 0.0
          %1166 = vmatprep.subr.mxu0 0.0
          %1167 = vmatpush2.msra.mxu0 0.0
          %1168 = vmatprep.subr.mxu0 0.0
          %1169 = vmatpush2.msra.mxu0 0.0
          %1170 = vmatprep.subr.mxu0 0.0
          %1171 = vmatpush2.msra.mxu0 0.0
          %1172 = vmatprep.subr.mxu0 0.0
          %1173 = vmatpush2.msra.mxu0 0.0
          %1174 = vmatprep.subr.mxu0 0.0
          %1175 = vmatpush2.msra.mxu0 0.0
          %1176 = vmatprep.subr.mxu0 0.0
          %1177 = vmatpush2.msra.mxu0 0.0
          %1178 = vmatprep.subr.mxu0 0.0
          %1179 = vmatpush2.msra.mxu0 0.0
          %1180 = vmatprep.subr.mxu0 0.0
          %1181 = vmatpush2.msra.mxu0 0.0
          %1182 = vmatprep.subr.mxu0 0.0
          %1183 = vmatpush2.msra.mxu0 0.0
          %1184 = vmatprep.mubr.f32.mxu0 0.0
          %1185 = vmatmul.mubr.f32.gmra.mxu0 %v1112
          %v1186 = vpop.f32.mrf.mxu0
          %v1187 = vadd.f32 0.0, %v1186
          %v1188 = vpop.f32.mrf.mxu0
          %1189 = vmatprep.mubr.f32.mxu0 0.0
          %1190 = vmatmul.mubr.f32.gmra.mxu0 %v1115
          %v1191 = vpop.f32.mrf.mxu0
          %v1192 = vadd.f32 0.0, %v1191
          %v1193 = vpop.f32.mrf.mxu0
          %1194 = vmatprep.mubr.f32.mxu0 0.0
          %1195 = vmatmul.mubr.f32.gmra.mxu0 %v1118
          %v1196 = vpop.f32.mrf.mxu0
          %v1197 = vadd.f32 0.0, %v1196
          %v1198 = vpop.f32.mrf.mxu0
          %1199 = vdwg.mxu0
          %v1200 = vld [vmem:[#allocation3] sm:$0xff]
          %v1201 = vld [vmem:[#allocation3 + $0x8] sm:$0xff]
          %v1202 = vlaneseq
          %v1203 = vshrl.u32 %v1202, 7
          %v1204 = vsub.s32 0, %v1203
          %v1205 = vrot.slane %v1197, %v1204
          %v1206 = vmul.f32 %v1205, %v1187
          %v1207 = vmul.f32 %v1205, %v1192
          %v1208 = vadd.f32 %v1200, %v1206
          %v1209 = vadd.f32 %v1201, %v1207
          %1210 = vst [vmem:[#allocation5] sm:$0xff] %v1208
          %1211 = vst [vmem:[#allocation5 + $0x8] sm:$0xff] %v1209
        $region68: #{tpu_custom_call.1} parent=59 // pred_fallthru
          _
        // Predicated region
        $region69: #{tpu_custom_call.1} parent=59 // pred_check
          %p1212 = pneg %p265
        $region70: #{tpu_custom_call.1} parent=59 // pred_check_branch
          %1214 = sbr.rel (%p1212) target = $region72
        $region71: #{tpu_custom_call.1} parent=59 // pred_region
          %s1216 = ssub.s32 256, 256
          %1217 = vsyncadd [#allocation6], %s1216
          %s1218 = sshll.u32 [#allocation5], 4
          %s1219 = int_to_ptr.vmem [resolvable:$true] %s1218
          %1224 = dma.vmem_to_hbm [thread:$0]  %s1219, 256, %s10, [#allocation6], 128, 128, 8
        $region72: #{tpu_custom_call.1} parent=59 // pred_fallthru
          _
        // Predicated region
        $region73: #{tpu_custom_call.1} parent=59 // pred_check
          %p1225 = pneg %p265
        $region74: #{tpu_custom_call.1} parent=59 // pred_check_branch
          %1227 = sbr.rel (%p1225) target = $region76
        $region75: #{tpu_custom_call.1} parent=59 // pred_region
          %1228 = dma.done [#allocation6], 256
        $region76: #{tpu_custom_call.1} parent=59 // pred_fallthru
          _
      $region60: #{tpu_custom_call.1} parent=5 // pred_fallthru
        _
      %p1229 = scmp.le.s32.totalorder 2, %s17
      // Predicated region
      $region77: #{tpu_custom_call.1} parent=5 // pred_check
        %p1230 = pneg %p1229
      $region78: #{tpu_custom_call.1} parent=5 // pred_check_branch
        %1232 = sbr.rel (%p1230) target = $region80
      $region79: #{tpu_custom_call.1} parent=5 // pred_region
        %s1233 = ssub.s32 %s17, 2
      $region80: #{tpu_custom_call.1} parent=5 // pred_fallthru
        _
    $region6: #{tpu_custom_call.1} parent=1 // loop_footer
      %s21 = sadd.s32 1, %s17
    $region7: #{tpu_custom_call.1} parent=1 // loop_footer_branch
      %16 = sbr.rel target = $region3
    $region8: #{tpu_custom_call.1} parent=1 // loop_exit
      _
    %1234 = vsyncpa [#allocation6], 1
    %s1235 = scalar_lea.sflag [#allocation6], 1
    %1236 = vsyncpa %s1235, 1

</llo_original>
